<compile_context>
chip_gen: v5e
topology: v5e:2x2
jax: 0.10.0
libtpu: 0.0.40
codegen_flags: <defaults>
</compile_context>

<pallas_src>
import functools
import math

import jax
import jax.numpy as jnp
from jax.experimental import pallas as pl
from jax.experimental.pallas import tpu as pltpu

_DEFAULT_SCALE_CLAMP = math.log(100000.0 / 16)
_BF16 = jnp.bfloat16
_F32 = jnp.float32


# ----------------------------------------------------------------------------- in-kernel helpers
def _layernorm(x, g, b, eps=1e-5):
    m = jnp.mean(x, axis=-1, keepdims=True)
    v = jnp.mean(jnp.square(x - m), axis=-1, keepdims=True)
    return (x - m) * jax.lax.rsqrt(v + eps) * g + b


def _softmax_last(x):
    x = x - jnp.max(x, axis=-1, keepdims=True)
    e = jnp.exp(x)
    return e / jnp.sum(e, axis=-1, keepdims=True)


# ----------------------------------------------------------------------------- kernel 1a
# grid = (N,) : per-image multi-head self-attention + residual + norm1.
def attn_norm_kernel(pro_ref, wqT, bq, wkT, bk, wvT, bv, woT, bo, n1g, n1b,
                     pro_out_ref, y16_ref, *, nhead, head_dim):
    x = pro_ref[0]                                          # (nr_boxes, d_model) f32
    xb = x.astype(_BF16)
    q_all = jnp.dot(xb, wqT[...], preferred_element_type=_F32) + bq[...]
    k_all = jnp.dot(xb, wkT[...], preferred_element_type=_F32) + bk[...]
    v_all = jnp.dot(xb, wvT[...], preferred_element_type=_F32) + bv[...]

    scale = 1.0 / math.sqrt(head_dim)
    heads = []
    # TODO(synk): could be one head-batched einsum, but the (rows, nhead, head_dim)
    # reshape/transpose is a risky sub-lane relayout at small head_dim and attention is not the
    # FLOP bulk; static lane slices are kept.
    for h in range(nhead):
        lo, hi = h * head_dim, (h + 1) * head_dim
        q = (q_all[:, lo:hi] * scale).astype(_BF16)
        k = k_all[:, lo:hi].astype(_BF16)
        v = v_all[:, lo:hi].astype(_BF16)
        s = jnp.einsum('qe,ke->qk', q, k, preferred_element_type=_F32)
        p = _softmax_last(s).astype(_BF16)
        heads.append(jnp.dot(p, v, preferred_element_type=_F32))
    concat = jnp.concatenate(heads, axis=-1).astype(_BF16)          # (nr_boxes, d_model)
    attn_out = jnp.dot(concat, woT[...], preferred_element_type=_F32) + bo[...]

    y = _layernorm(x + attn_out, n1g[...], n1b[...])                # dropout1 == identity
    pro_out_ref[0] = y
    y16_ref[0] = y.astype(_BF16)


# ----------------------------------------------------------------------------- kernel 1b
# grid = (num_params_tiles,) : DynamicConv.dynamic_layer (split into param1/param2 halves) over
# ALL B rows at once -> every weight tile is streamed from HBM exactly once, M = B.
def dyn_layer_kernel(y_ref, d1wT, d1b, d2wT, d2b, p1_ref, p2_ref):
    yb = y_ref[...]                                          # (B, d_model) bf16
    p1_ref[...] = (jnp.dot(yb, d1wT[...], preferred_element_type=_F32) + d1b[...]).astype(_BF16)
    p2_ref[...] = (jnp.dot(yb, d2wT[...], preferred_element_type=_F32) + d2b[...]).astype(_BF16)


# ----------------------------------------------------------------------------- kernel 2 (fused)
# grid = (B // TB,) : DynamicConv bmm/LN/ReLU chain + out_layer + norm3(DC) + residual + norm2 +
# FFN + norm3 + cls/reg towers + class_logits + bboxes_delta + apply_deltas, for TB boxes.
def dynconv_ffn_heads_kernel(pro_ref, roi_ref, p1_ref, p2_ref, boxes_ref,
                             dc_n1g, dc_n1b, dc_n2g, dc_n2b,
                             out_wT, out_b, dc_n3g, dc_n3b,
                             n2g, n2b, w1T, b1, w2T, b2, n3g, n3b,
                             cls_wT, cls_ng, cls_nb, cl_wT, cl_b,
                             rw0, rg0, rb0, rw1, rg1, rb1, rw2, rg2, rb2,
                             bbd_wT, bbd_b,
                             obj_ref, logits_ref, pred_ref,
                             *, pool, bbox_weights, scale_clamp):
    x = pro_ref[...]                                        # (TB, d_model) f32
    roi = roi_ref[...]                                      # (TB, pool, d_model) bf16
    p1 = p1_ref[...]                                        # (TB, d_model, dim_dynamic) bf16
    p2 = p2_ref[...]                                        # (TB, dim_dynamic, d_model) bf16

    # DynamicConv bmm chain, batched over the TB boxes of this block.
    f1 = jnp.einsum('bpd,bde->bpe', roi, p1, preferred_element_type=_F32)
    f1 = jnp.maximum(_layernorm(f1, dc_n1g[...], dc_n1b[...]), 0.0)
    f2 = jnp.einsum('bpe,bed->bpd', f1.astype(_BF16), p2, preferred_element_type=_F32)
    f2 = jnp.maximum(_layernorm(f2, dc_n2g[...], dc_n2b[...]), 0.0)

    # flatten(1) + out_layer as ONE dot with K = pool*d_model (instead of `pool` small dots and
    # loop-carried adds).  The slices are 128-lane aligned, so the concat is lane-dense.
    f2_flat = jnp.concatenate([f2[:, p, :] for p in range(pool)], axis=-1)   # (TB, pool*d)
    t = jnp.dot(f2_flat.astype(_BF16), out_wT[...], preferred_element_type=_F32) + out_b[...]
    t = jnp.maximum(_layernorm(t, dc_n3g[...], dc_n3b[...]), 0.0)

    # residual (dropout2 == identity) + norm2, FFN, residual (dropout3 == identity) + norm3
    y = _layernorm(x + t, n2g[...], n2b[...])
    h = jnp.maximum(jnp.dot(y.astype(_BF16), w1T[...], preferred_element_type=_F32) + b1[...],
                    0.0)
    z = jnp.dot(h.astype(_BF16), w2T[...], preferred_element_type=_F32) + b2[...]
    obj = _layernorm(y + z, n3g[...], n3b[...])
    obj_ref[...] = obj

    # classification tower + class_logits (weight padded to a 128-lane-dense width).
    cls_f = jnp.maximum(
        _layernorm(jnp.dot(obj.astype(_BF16), cls_wT[...], preferred_element_type=_F32),
                   cls_ng[...], cls_nb[...]), 0.0)
    logits_ref[...] = jnp.dot(cls_f.astype(_BF16), cl_wT[...],
                              preferred_element_type=_F32) + cl_b[...]

    # regression tower + bboxes_delta + apply_deltas (boxes are cxcywh, as in the reference
    # module which passes `bboxes` straight to apply_deltas).
    reg = obj
    for w, g, b in ((rw0, rg0, rb0), (rw1, rg1, rb1), (rw2, rg2, rb2)):
        reg = jnp.maximum(
            _layernorm(jnp.dot(reg.astype(_BF16), w[...], preferred_element_type=_F32),
                       g[...], b[...]), 0.0)
    deltas = jnp.dot(reg.astype(_BF16), bbd_wT[...], preferred_element_type=_F32) + bbd_b[...]

    wx, wy, ww, wh = bbox_weights
    boxes = boxes_ref[...]
    ctr_x, ctr_y = boxes[:, 0:1], boxes[:, 1:2]
    widths, heights = boxes[:, 2:3], boxes[:, 3:4]
    dx = deltas[:, 0:1] / wx
    dy = deltas[:, 1:2] / wy
    dw = jnp.minimum(deltas[:, 2:3] / ww, scale_clamp)
    dh = jnp.minimum(deltas[:, 3:4] / wh, scale_clamp)
    pred_ctr_x = dx * widths + ctr_x
    pred_ctr_y = dy * heights + ctr_y
    pred_w = jnp.exp(dw) * widths
    pred_h = jnp.exp(dh) * heights
    pred_ref[...] = jnp.concatenate([pred_ctr_x, pred_ctr_y, pred_w, pred_h], axis=-1)


# ----------------------------------------------------------------------------- plain-JAX glue: RoIAlign
def _roi_align_level(feat, boxes_xyxy, spatial_scale, out_size=7, sampling=2):
    """feat: (N, C, H, W), boxes_xyxy: (N, R, 4) absolute coords. Returns (N, R, C, 7, 7)."""
    _, C, H, W = feat.shape

    def one_box(f_chw, box):
        x1, y1 = box[0] * spatial_scale, box[1] * spatial_scale
        x2, y2 = box[2] * spatial_scale, box[3] * spatial_scale
        roi_w = jnp.maximum(x2 - x1, 1.0)
        roi_h = jnp.maximum(y2 - y1, 1.0)
        bin_w = roi_w / out_size
        bin_h = roi_h / out_size
        grid = (jnp.arange(out_size, dtype=jnp.float32)[:, None]
                + (jnp.arange(sampling, dtype=jnp.float32)[None, :] + 0.5) / sampling).reshape(-1)
        ys = y1 + grid * bin_h
        xs = x1 + grid * bin_w
        Y = ys[:, None] * jnp.ones_like(xs)[None, :]
        X = jnp.ones_like(ys)[:, None] * xs[None, :]
        valid = (Y >= -1.0) & (Y <= H) & (X >= -1.0) & (X <= W)
        yc = jnp.clip(Y, 0.0, H - 1.0)
        xc = jnp.clip(X, 0.0, W - 1.0)
        y0 = jnp.floor(yc).astype(jnp.int32)
        x0 = jnp.floor(xc).astype(jnp.int32)
        y1i = jnp.minimum(y0 + 1, H - 1)
        x1i = jnp.minimum(x0 + 1, W - 1)
        ly = yc - y0
        lx = xc - x0
        f00 = f_chw[:, y0, x0]
        f01 = f_chw[:, y0, x1i]
        f10 = f_chw[:, y1i, x0]
        f11 = f_chw[:, y1i, x1i]
        val = (((1 - ly) * (1 - lx))[None] * f00 + ((1 - ly) * lx)[None] * f01
               + (ly * (1 - lx))[None] * f10 + (ly * lx)[None] * f11)
        val = jnp.where(valid[None], val, 0.0)
        return val.reshape(C, out_size, sampling, out_size, sampling).mean(axis=(2, 4))

    per_image = jax.vmap(lambda f, bxs: jax.vmap(lambda b: one_box(f, b))(bxs))
    return per_image(feat, boxes_xyxy)


def _map_levels(boxes_xyxy, k_min, k_max, canonical_scale=224.0, canonical_level=4.0, eps=1e-6):
    w = jnp.clip(boxes_xyxy[..., 2] - boxes_xyxy[..., 0], 0.0)
    h = jnp.clip(boxes_xyxy[..., 3] - boxes_xyxy[..., 1], 0.0)
    s = jnp.sqrt(w * h)
    lvl = jnp.floor(canonical_level + jnp.log2(s / canonical_scale + eps))
    lvl = jnp.clip(lvl, k_min, k_max)
    return (lvl - k_min).astype(jnp.int32)


# ----------------------------------------------------------------------------- parameter init
def init_params(key, d_model, dim_ff, num_classes, dim_dynamic, pool=49):
    num_params = d_model * dim_dynamic
    cpad = ((num_classes + 127) // 128) * 128
    ks = iter(jax.random.split(key, 40))

    def xav(fan_in, fan_out, dtype=_BF16):
        lim = math.sqrt(6.0 / (fan_in + fan_out))
        return jax.random.uniform(next(ks), (fan_in, fan_out), _F32, -lim, lim).astype(dtype)

    zeros = lambda *s: jnp.zeros(s, _F32)
    ones = lambda *s: jnp.ones(s, _F32)

    # class_logits weight/bias padded to a 128-multiple so the kernel-2 store is lane-dense.
    cls_logits_wT = (jnp.zeros((d_model, cpad), _F32)
                     .at[:, :num_classes].set(xav(d_model, num_classes, _F32))
                     .astype(_BF16))
    cls_logits_b = (jnp.zeros((1, cpad), _F32)
                    .at[:, :num_classes].set(-math.log((1 - 0.01) / 0.01)))

    p = dict(
        wqT=xav(d_model, d_model), bq=zeros(1, d_model),
        wkT=xav(d_model, d_model), bk=zeros(1, d_model),
        wvT=xav(d_model, d_model), bv=zeros(1, d_model),
        woT=xav(d_model, d_model), bo=zeros(1, d_model),
        n1g=ones(1, d_model), n1b=zeros(1, d_model),
        # dynamic_layer split into param1 / param2 halves.
        dyn_w1T=xav(d_model, num_params), dyn_b1=zeros(1, num_params),
        dyn_w2T=xav(d_model, num_params), dyn_b2=zeros(1, num_params),
        dc_n1g=ones(1, dim_dynamic), dc_n1b=zeros(1, dim_dynamic),
        dc_n2g=ones(1, d_model), dc_n2b=zeros(1, d_model),
        # out_layer weight stored transposed: (pool*d_model, d_model), rows ordered p*d + c,
        # exactly matching torch flatten(1).
        out_wT=xav(pool * d_model, d_model), out_b=zeros(1, d_model),
        dc_n3g=ones(1, d_model), dc_n3b=zeros(1, d_model),
        n2g=ones(1, d_model), n2b=zeros(1, d_model),
        w1T=xav(d_model, dim_ff), b1=zeros(1, dim_ff),
        w2T=xav(dim_ff, d_model), b2=zeros(1, d_model),
        n3g=ones(1, d_model), n3b=zeros(1, d_model),
        cls_wT=xav(d_model, d_model), cls_ng=ones(1, d_model), cls_nb=zeros(1, d_model),
        cls_logits_wT=cls_logits_wT, cls_logits_b=cls_logits_b,
        bbd_wT=jnp.zeros((d_model, 4), _BF16), bbd_b=zeros(1, 4),   # zero-init per init_weights()
    )
    for i in range(3):
        p[f'reg_wT_{i}'] = xav(d_model, d_model)
        p[f'reg_ng_{i}'] = ones(1, d_model)
        p[f'reg_nb_{i}'] = zeros(1, d_model)
    return p


# ----------------------------------------------------------------------------- tiling helpers
def _const_spec(shape):
    nd = len(shape)
    return pl.BlockSpec(shape, lambda *_, _nd=nd: (0,) * _nd)


def _vmem_limit_bytes():
    # ~3/4 of physical VMEM: ~96 MiB on v5e/v6e (128 MiB), ~48 MiB on v7x / unknown (64 MiB).
    cap = 64 * 1024 * 1024
    try:
        info = pltpu.get_tpu_info()
        cap = int(getattr(info, "vmem_capacity_bytes", cap))
    except Exception:
        pass
    return (cap * 3) // 4


def _pick_param_tile(num_params, target=4096):
    t = min(num_params, target)
    t -= t % 128
    while t >= 128:
        if num_params % t == 0:
            return t
        t -= 128
    return num_params


def _pick_box_block(total, target):
    if total % 8 != 0:
        return total
    tb = 8
    t = min(target, total)
    t -= t % 8
    for cand in range(t, 7, -8):
        if total % cand == 0:
            tb = cand
            break
    # prefer >= 2 grid steps so both v7x TensorCores get work
    while total // tb < 2 and tb % 16 == 0 and total % (tb // 2) == 0:
        tb //= 2
    return tb


# ----------------------------------------------------------------------------- forward
def rcnn_head_forward(params, features, bboxes, pro_features, imgs_whwh, num_classes, nhead=8):
    N, nr_boxes, _ = bboxes.shape
    d_model = pro_features.shape[-1]
    B = N * nr_boxes
    head_dim = d_model // nhead
    dim_dynamic = params['dc_n1g'].shape[-1]
    num_params = d_model * dim_dynamic
    pool = params['out_wT'].shape[0] // d_model
    cpad = params['cls_logits_wT'].shape[-1]
    vmem_limit = _vmem_limit_bytes()

    # ---- box pooler (MultiScaleRoIAlign, torchvision semantics) — plain-JAX glue --------------
    xyxy = jnp.concatenate([bboxes[..., 0:1] - bboxes[..., 2:3] * 0.5,
                            bboxes[..., 1:2] - bboxes[..., 3:4] * 0.5,
                            bboxes[..., 0:1] + bboxes[..., 2:3] * 0.5,
                            bboxes[..., 1:2] + bboxes[..., 3:4] * 0.5], axis=-1)
    proposals = xyxy * imgs_whwh                                   # absolute xyxy
    img_h = float(imgs_whwh[0, 0, 1])
    scales = [2.0 ** round(math.log2(f.shape[-2] / img_h)) for f in features]
    k_min, k_max = -math.log2(scales[0]), -math.log2(scales[-1])
    lvl_idx = _map_levels(proposals, k_min, k_max)                 # (N, R)
    # TODO(synk): at production sizes, bucket boxes by FPN level (or gather inside a Pallas
    #             kernel with scalar-prefetched level indices) instead of pooling every box at
    #             every level and masking.
    pooled = None
    for li, (f, s) in enumerate(zip(features, scales)):
        pooled_l = _roi_align_level(f, proposals, s, out_size=7, sampling=2)   # (N,R,C,7,7)
        m = (lvl_idx == li).astype(pooled_l.dtype)[..., None, None, None]
        pooled = pooled_l * m if pooled is None else pooled + pooled_l * m
    # roi cast to bf16 in the wrapper: halves HBM traffic / VMEM of kernel 2's biggest input.
    roi = pooled.reshape(B, d_model, pool).transpose(0, 2, 1).astype(_BF16)    # (B, 49, d)

    # ---- kernel 1a: per-image self-attention + residual + norm1 --------------------------------
    const1 = ('wqT', 'bq', 'wkT', 'bk', 'wvT', 'bv', 'woT', 'bo', 'n1g', 'n1b')
    k1a = functools.partial(attn_norm_kernel, nhead=nhead, head_dim=head_dim)
    pro_norm, y16 = pl.pallas_call(
        k1a,
        grid=(N,),
        in_specs=[pl.BlockSpec((1, nr_boxes, d_model), lambda n: (n, 0, 0))]
                 + [_const_spec(params[k].shape) for k in const1],
        out_specs=[pl.BlockSpec((1, nr_boxes, d_model), lambda n: (n, 0, 0)),
                   pl.BlockSpec((1, nr_boxes, d_model), lambda n: (n, 0, 0))],
        out_shape=[jax.ShapeDtypeStruct((N, nr_boxes, d_model), _F32),
                   jax.ShapeDtypeStruct((N, nr_boxes, d_model), _BF16)],
        compiler_params=pltpu.CompilerParams(
            dimension_semantics=("parallel",), vmem_limit_bytes=vmem_limit),
    )(pro_features, *[params[k] for k in const1])

    pro_flat = pro_norm.reshape(B, d_model)
    yb_flat = y16.reshape(B, d_model)
    boxes_flat = bboxes.reshape(B, 4)

    # ---- kernel 1b: dynamic_layer over ALL boxes, tiled over num_params ------------------------
    tnp = _pick_param_tile(num_params)
    nt = num_params // tnp
    P1, P2 = pl.pallas_call(
        dyn_layer_kernel,
        grid=(nt,),
        in_specs=[pl.BlockSpec((B, d_model), lambda j: (0, 0)),
                  pl.BlockSpec((d_model, tnp), lambda j: (0, j)),
                  pl.BlockSpec((1, tnp), lambda j: (0, j)),
                  pl.BlockSpec((d_model, tnp), lambda j: (0, j)),
                  pl.BlockSpec((1, tnp), lambda j: (0, j))],
        out_specs=[pl.BlockSpec((B, tnp), lambda j: (0, j)),
                   pl.BlockSpec((B, tnp), lambda j: (0, j))],
        out_shape=[jax.ShapeDtypeStruct((B, num_params), _BF16),
                   jax.ShapeDtypeStruct((B, num_params), _BF16)],
        compiler_params=pltpu.CompilerParams(
            dimension_semantics=("parallel",), vmem_limit_bytes=vmem_limit),
    )(yb_flat, params['dyn_w1T'], params['dyn_b1'], params['dyn_w2T'], params['dyn_b2'])

    param1 = P1.reshape(B, d_model, dim_dynamic)      # contiguous reshapes, no slicing copy
    param2 = P2.reshape(B, dim_dynamic, d_model)

    # ---- kernel 2: DynamicConv + norm2 + FFN + norm3 + cls/reg heads (blocked over boxes) ------
    tb_target = 64 if vmem_limit <= (48 << 20) else 128            # v7x: 64, v5e/v6e: 128
    tb = _pick_box_block(B, tb_target)
    k2 = functools.partial(dynconv_ffn_heads_kernel, pool=pool,
                           bbox_weights=(2.0, 2.0, 1.0, 1.0),
                           scale_clamp=_DEFAULT_SCALE_CLAMP)
    const2 = ('dc_n1g', 'dc_n1b', 'dc_n2g', 'dc_n2b',
              'out_wT', 'out_b', 'dc_n3g', 'dc_n3b',
              'n2g', 'n2b', 'w1T', 'b1', 'w2T', 'b2', 'n3g', 'n3b',
              'cls_wT', 'cls_ng', 'cls_nb', 'cls_logits_wT', 'cls_logits_b',
              'reg_wT_0', 'reg_ng_0', 'reg_nb_0',
              'reg_wT_1', 'reg_ng_1', 'reg_nb_1',
              'reg_wT_2', 'reg_ng_2', 'reg_nb_2',
              'bbd_wT', 'bbd_b')
    obj, logits_pad, pred = pl.pallas_call(
        k2,
        grid=(B // tb,),
        in_specs=[pl.BlockSpec((tb, d_model), lambda b: (b, 0)),
                  pl.BlockSpec((tb, pool, d_model), lambda b: (b, 0, 0)),
                  pl.BlockSpec((tb, d_model, dim_dynamic), lambda b: (b, 0, 0)),
                  pl.BlockSpec((tb, dim_dynamic, d_model), lambda b: (b, 0, 0)),
                  pl.BlockSpec((tb, 4), lambda b: (b, 0))]
                 + [_const_spec(params[k].shape) for k in const2],
        out_specs=[pl.BlockSpec((tb, d_model), lambda b: (b, 0)),
                   pl.BlockSpec((tb, cpad), lambda b: (b, 0)),
                   pl.BlockSpec((tb, 4), lambda b: (b, 0))],
        out_shape=[jax.ShapeDtypeStruct((B, d_model), _F32),
                   jax.ShapeDtypeStruct((B, cpad), _F32),
                   jax.ShapeDtypeStruct((B, 4), _F32)],
        compiler_params=pltpu.CompilerParams(
            dimension_semantics=("parallel",), vmem_limit_bytes=vmem_limit),
    )(pro_flat, roi, param1, param2, boxes_flat, *[params[k] for k in const2])

    class_logits = logits_pad[:, :num_classes].reshape(N, nr_boxes, num_classes)
    pred_bboxes = pred.reshape(N, nr_boxes, 4)
    obj_features = obj.reshape(1, B, d_model)
    return class_logits, pred_bboxes, obj_features


# ----------------------------------------------------------------------------- main
if __name__ == "__main__":
    key = jax.random.PRNGKey(0)
    keys = jax.random.split(key, 8)

    N, nr_boxes = 2, 8
    d_model, nhead = 128, 8
    dim_ff = 256
    num_classes = 8
    dim_dynamic = 64
    img_h = img_w = 64
    feat_sizes = [16, 8, 4, 2]          # C2..C5 (strides 4, 8, 16, 32)

    features = [jax.random.normal(keys[i], (N, d_model, s, s), jnp.float32)
                for i, s in enumerate(feat_sizes)]
    cxcy = jax.random.uniform(keys[4], (N, nr_boxes, 2), jnp.float32, 0.3, 0.7)
    wh = jax.random.uniform(keys[5], (N, nr_boxes, 2), jnp.float32, 0.1, 0.4)
    bboxes = jnp.concatenate([cxcy, wh], axis=-1)                   # normalized cxcywh
    pro_features = jax.random.normal(keys[6], (N, nr_boxes, d_model), jnp.float32)
    imgs_whwh = jnp.tile(jnp.array([[float(img_w), float(img_h), float(img_w), float(img_h)]],
                                   jnp.float32), (N, 1)).reshape(N, 1, 4)

    params = init_params(keys[7], d_model, dim_ff, num_classes, dim_dynamic)

    class_logits, pred_bboxes, obj_features = rcnn_head_forward(
        params, features, bboxes, pro_features, imgs_whwh, num_classes, nhead=nhead)
    jax.block_until_ready((class_logits, pred_bboxes, obj_features))

    assert class_logits.shape == (N, nr_boxes, num_classes)
    assert pred_bboxes.shape == (N, nr_boxes, 4)
    assert obj_features.shape == (1, N * nr_boxes, d_model)
    print("KERNEL_OK")
</pallas_src>

<mosaic_0001>
module attributes {stable_mosaic.version = 11 : i64} {
  func.func @attn_norm_kernel(%arg0: i32, %arg1: memref<1x8x128xf32, #tpu.memory_space<vmem>>, %arg2: memref<128x128xbf16, #tpu.memory_space<vmem>>, %arg3: memref<1x128xf32, #tpu.memory_space<vmem>>, %arg4: memref<128x128xbf16, #tpu.memory_space<vmem>>, %arg5: memref<1x128xf32, #tpu.memory_space<vmem>>, %arg6: memref<128x128xbf16, #tpu.memory_space<vmem>>, %arg7: memref<1x128xf32, #tpu.memory_space<vmem>>, %arg8: memref<128x128xbf16, #tpu.memory_space<vmem>>, %arg9: memref<1x128xf32, #tpu.memory_space<vmem>>, %arg10: memref<1x128xf32, #tpu.memory_space<vmem>>, %arg11: memref<1x128xf32, #tpu.memory_space<vmem>>, %arg12: memref<1x8x128xf32, #tpu.memory_space<vmem>>, %arg13: memref<1x8x128xbf16, #tpu.memory_space<vmem>>) attributes {dimension_semantics = [#tpu.dimension_semantics<parallel>], iteration_bounds = array<i64: 2>, scalar_prefetch = 0 : i64, scratch_operands = 0 : i64, tpu.core_type = #tpu.core_type<tc>, window_params = [{transform_indices = @transform_0, window_bounds = array<i64: 1, 8, 128>}, {pipeline_mode = #tpu.pipeline_mode<synchronous>, transform_indices = @transform_1, window_bounds = array<i64: 128, 128>}, {pipeline_mode = #tpu.pipeline_mode<synchronous>, transform_indices = @transform_2, window_bounds = array<i64: 1, 128>}, {pipeline_mode = #tpu.pipeline_mode<synchronous>, transform_indices = @transform_3, window_bounds = array<i64: 128, 128>}, {pipeline_mode = #tpu.pipeline_mode<synchronous>, transform_indices = @transform_4, window_bounds = array<i64: 1, 128>}, {pipeline_mode = #tpu.pipeline_mode<synchronous>, transform_indices = @transform_5, window_bounds = array<i64: 128, 128>}, {pipeline_mode = #tpu.pipeline_mode<synchronous>, transform_indices = @transform_6, window_bounds = array<i64: 1, 128>}, {pipeline_mode = #tpu.pipeline_mode<synchronous>, transform_indices = @transform_7, window_bounds = array<i64: 128, 128>}, {pipeline_mode = #tpu.pipeline_mode<synchronous>, transform_indices = @transform_8, window_bounds = array<i64: 1, 128>}, {pipeline_mode = #tpu.pipeline_mode<synchronous>, transform_indices = @transform_9, window_bounds = array<i64: 1, 128>}, {pipeline_mode = #tpu.pipeline_mode<synchronous>, transform_indices = @transform_10, window_bounds = array<i64: 1, 128>}, {transform_indices = @transform_11, window_bounds = array<i64: 1, 8, 128>}, {transform_indices = @transform_12, window_bounds = array<i64: 1, 8, 128>}]} {
    %c0 = arith.constant 0 : index
    %c0_0 = arith.constant 0 : index
    %c0_1 = arith.constant 0 : index
    %0 = vector.load %arg1[%c0, %c0_0, %c0_1] : memref<1x8x128xf32, #tpu.memory_space<vmem>>, vector<1x8x128xf32>
    %1 = vector.shape_cast %0 : vector<1x8x128xf32> to vector<8x128xf32>
    %2 = arith.truncf %1 : vector<8x128xf32> to vector<8x128xbf16>
    %c0_2 = arith.constant 0 : index
    %c0_3 = arith.constant 0 : index
    %3 = vector.load %arg2[%c0_2, %c0_3] : memref<128x128xbf16, #tpu.memory_space<vmem>>, vector<128x128xbf16>
    %cst = arith.constant dense<0.000000e+00> : vector<8x128xf32>
    %4 = tpu.matmul %2, %3, %cst {dimension_numbers = #tpu.dot_dimension_numbers<[1], [0], [0], [1], [0, 0, 1, 1], [], []>} : vector<8x128xbf16>, vector<128x128xbf16>, vector<8x128xf32> -> vector<8x128xf32>
    %c0_4 = arith.constant 0 : index
    %c0_5 = arith.constant 0 : index
    %5 = vector.load %arg3[%c0_4, %c0_5] : memref<1x128xf32, #tpu.memory_space<vmem>>, vector<1x128xf32>
    %6 = vector.broadcast %5 : vector<1x128xf32> to vector<8x128xf32>
    %7 = arith.addf %4, %6 : vector<8x128xf32>
    %c0_6 = arith.constant 0 : index
    %c0_7 = arith.constant 0 : index
    %8 = vector.load %arg4[%c0_6, %c0_7] : memref<128x128xbf16, #tpu.memory_space<vmem>>, vector<128x128xbf16>
    %cst_8 = arith.constant dense<0.000000e+00> : vector<8x128xf32>
    %9 = tpu.matmul %2, %8, %cst_8 {dimension_numbers = #tpu.dot_dimension_numbers<[1], [0], [0], [1], [0, 0, 1, 1], [], []>} : vector<8x128xbf16>, vector<128x128xbf16>, vector<8x128xf32> -> vector<8x128xf32>
    %c0_9 = arith.constant 0 : index
    %c0_10 = arith.constant 0 : index
    %10 = vector.load %arg5[%c0_9, %c0_10] : memref<1x128xf32, #tpu.memory_space<vmem>>, vector<1x128xf32>
    %11 = vector.broadcast %10 : vector<1x128xf32> to vector<8x128xf32>
    %12 = arith.addf %9, %11 : vector<8x128xf32>
    %c0_11 = arith.constant 0 : index
    %c0_12 = arith.constant 0 : index
    %13 = vector.load %arg6[%c0_11, %c0_12] : memref<128x128xbf16, #tpu.memory_space<vmem>>, vector<128x128xbf16>
    %cst_13 = arith.constant dense<0.000000e+00> : vector<8x128xf32>
    %14 = tpu.matmul %2, %13, %cst_13 {dimension_numbers = #tpu.dot_dimension_numbers<[1], [0], [0], [1], [0, 0, 1, 1], [], []>} : vector<8x128xbf16>, vector<128x128xbf16>, vector<8x128xf32> -> vector<8x128xf32>
    %c0_14 = arith.constant 0 : index
    %c0_15 = arith.constant 0 : index
    %15 = vector.load %arg7[%c0_14, %c0_15] : memref<1x128xf32, #tpu.memory_space<vmem>>, vector<1x128xf32>
    %16 = vector.broadcast %15 : vector<1x128xf32> to vector<8x128xf32>
    %17 = arith.addf %14, %16 : vector<8x128xf32>
    %18 = vector.extract_strided_slice %7 {offsets = [0, 0], sizes = [8, 16], strides = [1, 1]} : vector<8x128xf32> to vector<8x16xf32>
    %cst_16 = arith.constant 2.500000e-01 : f32
    %19 = vector.broadcast %cst_16 : f32 to vector<8x16xf32>
    %20 = arith.mulf %18, %19 : vector<8x16xf32>
    %21 = arith.truncf %20 : vector<8x16xf32> to vector<8x16xbf16>
    %22 = vector.extract_strided_slice %12 {offsets = [0, 0], sizes = [8, 16], strides = [1, 1]} : vector<8x128xf32> to vector<8x16xf32>
    %23 = arith.truncf %22 : vector<8x16xf32> to vector<8x16xbf16>
    %24 = vector.extract_strided_slice %17 {offsets = [0, 0], sizes = [8, 16], strides = [1, 1]} : vector<8x128xf32> to vector<8x16xf32>
    %25 = arith.truncf %24 : vector<8x16xf32> to vector<8x16xbf16>
    "tpu.trace_start"() <{level = 10 : i32, message = "qe,ke->qk"}> : () -> ()
    %cst_17 = arith.constant dense<0.000000e+00> : vector<8x8xf32>
    %26 = tpu.matmul %21, %23, %cst_17 {dimension_numbers = #tpu.dot_dimension_numbers<[1], [1], [0], [0], [0, 0, 1, 0], [], []>} : vector<8x16xbf16>, vector<8x16xbf16>, vector<8x8xf32> -> vector<8x8xf32>
    "tpu.trace_stop"() : () -> ()
    %cst_18 = arith.constant dense<0xFF800000> : vector<8xf32>
    %27 = vector.multi_reduction <maximumf>, %26, %cst_18 [1] : vector<8x8xf32> to vector<8xf32>
    %28 = vector.shape_cast %27 : vector<8xf32> to vector<8x1xf32>
    %29 = vector.broadcast %28 : vector<8x1xf32> to vector<8x8xf32>
    %30 = arith.subf %26, %29 : vector<8x8xf32>
    %31 = math.exp %30 : vector<8x8xf32>
    %cst_19 = arith.constant dense<0.000000e+00> : vector<8xf32>
    %32 = vector.multi_reduction <add>, %31, %cst_19 [1] : vector<8x8xf32> to vector<8xf32>
    %33 = vector.shape_cast %32 : vector<8xf32> to vector<8x1xf32>
    %34 = vector.broadcast %33 : vector<8x1xf32> to vector<8x8xf32>
    %35 = arith.divf %31, %34 : vector<8x8xf32>
    %36 = arith.truncf %35 : vector<8x8xf32> to vector<8x8xbf16>
    %cst_20 = arith.constant dense<0.000000e+00> : vector<8x16xf32>
    %37 = tpu.matmul %36, %25, %cst_20 {dimension_numbers = #tpu.dot_dimension_numbers<[1], [0], [0], [1], [0, 0, 1, 1], [], []>} : vector<8x8xbf16>, vector<8x16xbf16>, vector<8x16xf32> -> vector<8x16xf32>
    %38 = vector.extract_strided_slice %7 {offsets = [0, 16], sizes = [8, 16], strides = [1, 1]} : vector<8x128xf32> to vector<8x16xf32>
    %cst_21 = arith.constant 2.500000e-01 : f32
    %39 = vector.broadcast %cst_21 : f32 to vector<8x16xf32>
    %40 = arith.mulf %38, %39 : vector<8x16xf32>
    %41 = arith.truncf %40 : vector<8x16xf32> to vector<8x16xbf16>
    %42 = vector.extract_strided_slice %12 {offsets = [0, 16], sizes = [8, 16], strides = [1, 1]} : vector<8x128xf32> to vector<8x16xf32>
    %43 = arith.truncf %42 : vector<8x16xf32> to vector<8x16xbf16>
    %44 = vector.extract_strided_slice %17 {offsets = [0, 16], sizes = [8, 16], strides = [1, 1]} : vector<8x128xf32> to vector<8x16xf32>
    %45 = arith.truncf %44 : vector<8x16xf32> to vector<8x16xbf16>
    "tpu.trace_start"() <{level = 10 : i32, message = "qe,ke->qk"}> : () -> ()
    %cst_22 = arith.constant dense<0.000000e+00> : vector<8x8xf32>
    %46 = tpu.matmul %41, %43, %cst_22 {dimension_numbers = #tpu.dot_dimension_numbers<[1], [1], [0], [0], [0, 0, 1, 0], [], []>} : vector<8x16xbf16>, vector<8x16xbf16>, vector<8x8xf32> -> vector<8x8xf32>
    "tpu.trace_stop"() : () -> ()
    %cst_23 = arith.constant dense<0xFF800000> : vector<8xf32>
    %47 = vector.multi_reduction <maximumf>, %46, %cst_23 [1] : vector<8x8xf32> to vector<8xf32>
    %48 = vector.shape_cast %47 : vector<8xf32> to vector<8x1xf32>
    %49 = vector.broadcast %48 : vector<8x1xf32> to vector<8x8xf32>
    %50 = arith.subf %46, %49 : vector<8x8xf32>
    %51 = math.exp %50 : vector<8x8xf32>
    %cst_24 = arith.constant dense<0.000000e+00> : vector<8xf32>
    %52 = vector.multi_reduction <add>, %51, %cst_24 [1] : vector<8x8xf32> to vector<8xf32>
    %53 = vector.shape_cast %52 : vector<8xf32> to vector<8x1xf32>
    %54 = vector.broadcast %53 : vector<8x1xf32> to vector<8x8xf32>
    %55 = arith.divf %51, %54 : vector<8x8xf32>
    %56 = arith.truncf %55 : vector<8x8xf32> to vector<8x8xbf16>
    %cst_25 = arith.constant dense<0.000000e+00> : vector<8x16xf32>
    %57 = tpu.matmul %56, %45, %cst_25 {dimension_numbers = #tpu.dot_dimension_numbers<[1], [0], [0], [1], [0, 0, 1, 1], [], []>} : vector<8x8xbf16>, vector<8x16xbf16>, vector<8x16xf32> -> vector<8x16xf32>
    %58 = vector.extract_strided_slice %7 {offsets = [0, 32], sizes = [8, 16], strides = [1, 1]} : vector<8x128xf32> to vector<8x16xf32>
    %cst_26 = arith.constant 2.500000e-01 : f32
    %59 = vector.broadcast %cst_26 : f32 to vector<8x16xf32>
    %60 = arith.mulf %58, %59 : vector<8x16xf32>
    %61 = arith.truncf %60 : vector<8x16xf32> to vector<8x16xbf16>
    %62 = vector.extract_strided_slice %12 {offsets = [0, 32], sizes = [8, 16], strides = [1, 1]} : vector<8x128xf32> to vector<8x16xf32>
    %63 = arith.truncf %62 : vector<8x16xf32> to vector<8x16xbf16>
    %64 = vector.extract_strided_slice %17 {offsets = [0, 32], sizes = [8, 16], strides = [1, 1]} : vector<8x128xf32> to vector<8x16xf32>
    %65 = arith.truncf %64 : vector<8x16xf32> to vector<8x16xbf16>
    "tpu.trace_start"() <{level = 10 : i32, message = "qe,ke->qk"}> : () -> ()
    %cst_27 = arith.constant dense<0.000000e+00> : vector<8x8xf32>
    %66 = tpu.matmul %61, %63, %cst_27 {dimension_numbers = #tpu.dot_dimension_numbers<[1], [1], [0], [0], [0, 0, 1, 0], [], []>} : vector<8x16xbf16>, vector<8x16xbf16>, vector<8x8xf32> -> vector<8x8xf32>
    "tpu.trace_stop"() : () -> ()
    %cst_28 = arith.constant dense<0xFF800000> : vector<8xf32>
    %67 = vector.multi_reduction <maximumf>, %66, %cst_28 [1] : vector<8x8xf32> to vector<8xf32>
    %68 = vector.shape_cast %67 : vector<8xf32> to vector<8x1xf32>
    %69 = vector.broadcast %68 : vector<8x1xf32> to vector<8x8xf32>
    %70 = arith.subf %66, %69 : vector<8x8xf32>
    %71 = math.exp %70 : vector<8x8xf32>
    %cst_29 = arith.constant dense<0.000000e+00> : vector<8xf32>
    %72 = vector.multi_reduction <add>, %71, %cst_29 [1] : vector<8x8xf32> to vector<8xf32>
    %73 = vector.shape_cast %72 : vector<8xf32> to vector<8x1xf32>
    %74 = vector.broadcast %73 : vector<8x1xf32> to vector<8x8xf32>
    %75 = arith.divf %71, %74 : vector<8x8xf32>
    %76 = arith.truncf %75 : vector<8x8xf32> to vector<8x8xbf16>
    %cst_30 = arith.constant dense<0.000000e+00> : vector<8x16xf32>
    %77 = tpu.matmul %76, %65, %cst_30 {dimension_numbers = #tpu.dot_dimension_numbers<[1], [0], [0], [1], [0, 0, 1, 1], [], []>} : vector<8x8xbf16>, vector<8x16xbf16>, vector<8x16xf32> -> vector<8x16xf32>
    %78 = vector.extract_strided_slice %7 {offsets = [0, 48], sizes = [8, 16], strides = [1, 1]} : vector<8x128xf32> to vector<8x16xf32>
    %cst_31 = arith.constant 2.500000e-01 : f32
    %79 = vector.broadcast %cst_31 : f32 to vector<8x16xf32>
    %80 = arith.mulf %78, %79 : vector<8x16xf32>
    %81 = arith.truncf %80 : vector<8x16xf32> to vector<8x16xbf16>
    %82 = vector.extract_strided_slice %12 {offsets = [0, 48], sizes = [8, 16], strides = [1, 1]} : vector<8x128xf32> to vector<8x16xf32>
    %83 = arith.truncf %82 : vector<8x16xf32> to vector<8x16xbf16>
    %84 = vector.extract_strided_slice %17 {offsets = [0, 48], sizes = [8, 16], strides = [1, 1]} : vector<8x128xf32> to vector<8x16xf32>
    %85 = arith.truncf %84 : vector<8x16xf32> to vector<8x16xbf16>
    "tpu.trace_start"() <{level = 10 : i32, message = "qe,ke->qk"}> : () -> ()
    %cst_32 = arith.constant dense<0.000000e+00> : vector<8x8xf32>
    %86 = tpu.matmul %81, %83, %cst_32 {dimension_numbers = #tpu.dot_dimension_numbers<[1], [1], [0], [0], [0, 0, 1, 0], [], []>} : vector<8x16xbf16>, vector<8x16xbf16>, vector<8x8xf32> -> vector<8x8xf32>
    "tpu.trace_stop"() : () -> ()
    %cst_33 = arith.constant dense<0xFF800000> : vector<8xf32>
    %87 = vector.multi_reduction <maximumf>, %86, %cst_33 [1] : vector<8x8xf32> to vector<8xf32>
    %88 = vector.shape_cast %87 : vector<8xf32> to vector<8x1xf32>
    %89 = vector.broadcast %88 : vector<8x1xf32> to vector<8x8xf32>
    %90 = arith.subf %86, %89 : vector<8x8xf32>
    %91 = math.exp %90 : vector<8x8xf32>
    %cst_34 = arith.constant dense<0.000000e+00> : vector<8xf32>
    %92 = vector.multi_reduction <add>, %91, %cst_34 [1] : vector<8x8xf32> to vector<8xf32>
    %93 = vector.shape_cast %92 : vector<8xf32> to vector<8x1xf32>
    %94 = vector.broadcast %93 : vector<8x1xf32> to vector<8x8xf32>
    %95 = arith.divf %91, %94 : vector<8x8xf32>
    %96 = arith.truncf %95 : vector<8x8xf32> to vector<8x8xbf16>
    %cst_35 = arith.constant dense<0.000000e+00> : vector<8x16xf32>
    %97 = tpu.matmul %96, %85, %cst_35 {dimension_numbers = #tpu.dot_dimension_numbers<[1], [0], [0], [1], [0, 0, 1, 1], [], []>} : vector<8x8xbf16>, vector<8x16xbf16>, vector<8x16xf32> -> vector<8x16xf32>
    %98 = vector.extract_strided_slice %7 {offsets = [0, 64], sizes = [8, 16], strides = [1, 1]} : vector<8x128xf32> to vector<8x16xf32>
    %cst_36 = arith.constant 2.500000e-01 : f32
    %99 = vector.broadcast %cst_36 : f32 to vector<8x16xf32>
    %100 = arith.mulf %98, %99 : vector<8x16xf32>
    %101 = arith.truncf %100 : vector<8x16xf32> to vector<8x16xbf16>
    %102 = vector.extract_strided_slice %12 {offsets = [0, 64], sizes = [8, 16], strides = [1, 1]} : vector<8x128xf32> to vector<8x16xf32>
    %103 = arith.truncf %102 : vector<8x16xf32> to vector<8x16xbf16>
    %104 = vector.extract_strided_slice %17 {offsets = [0, 64], sizes = [8, 16], strides = [1, 1]} : vector<8x128xf32> to vector<8x16xf32>
    %105 = arith.truncf %104 : vector<8x16xf32> to vector<8x16xbf16>
    "tpu.trace_start"() <{level = 10 : i32, message = "qe,ke->qk"}> : () -> ()
    %cst_37 = arith.constant dense<0.000000e+00> : vector<8x8xf32>
    %106 = tpu.matmul %101, %103, %cst_37 {dimension_numbers = #tpu.dot_dimension_numbers<[1], [1], [0], [0], [0, 0, 1, 0], [], []>} : vector<8x16xbf16>, vector<8x16xbf16>, vector<8x8xf32> -> vector<8x8xf32>
    "tpu.trace_stop"() : () -> ()
    %cst_38 = arith.constant dense<0xFF800000> : vector<8xf32>
    %107 = vector.multi_reduction <maximumf>, %106, %cst_38 [1] : vector<8x8xf32> to vector<8xf32>
    %108 = vector.shape_cast %107 : vector<8xf32> to vector<8x1xf32>
    %109 = vector.broadcast %108 : vector<8x1xf32> to vector<8x8xf32>
    %110 = arith.subf %106, %109 : vector<8x8xf32>
    %111 = math.exp %110 : vector<8x8xf32>
    %cst_39 = arith.constant dense<0.000000e+00> : vector<8xf32>
    %112 = vector.multi_reduction <add>, %111, %cst_39 [1] : vector<8x8xf32> to vector<8xf32>
    %113 = vector.shape_cast %112 : vector<8xf32> to vector<8x1xf32>
    %114 = vector.broadcast %113 : vector<8x1xf32> to vector<8x8xf32>
    %115 = arith.divf %111, %114 : vector<8x8xf32>
    %116 = arith.truncf %115 : vector<8x8xf32> to vector<8x8xbf16>
    %cst_40 = arith.constant dense<0.000000e+00> : vector<8x16xf32>
    %117 = tpu.matmul %116, %105, %cst_40 {dimension_numbers = #tpu.dot_dimension_numbers<[1], [0], [0], [1], [0, 0, 1, 1], [], []>} : vector<8x8xbf16>, vector<8x16xbf16>, vector<8x16xf32> -> vector<8x16xf32>
    %118 = vector.extract_strided_slice %7 {offsets = [0, 80], sizes = [8, 16], strides = [1, 1]} : vector<8x128xf32> to vector<8x16xf32>
    %cst_41 = arith.constant 2.500000e-01 : f32
    %119 = vector.broadcast %cst_41 : f32 to vector<8x16xf32>
    %120 = arith.mulf %118, %119 : vector<8x16xf32>
    %121 = arith.truncf %120 : vector<8x16xf32> to vector<8x16xbf16>
    %122 = vector.extract_strided_slice %12 {offsets = [0, 80], sizes = [8, 16], strides = [1, 1]} : vector<8x128xf32> to vector<8x16xf32>
    %123 = arith.truncf %122 : vector<8x16xf32> to vector<8x16xbf16>
    %124 = vector.extract_strided_slice %17 {offsets = [0, 80], sizes = [8, 16], strides = [1, 1]} : vector<8x128xf32> to vector<8x16xf32>
    %125 = arith.truncf %124 : vector<8x16xf32> to vector<8x16xbf16>
    "tpu.trace_start"() <{level = 10 : i32, message = "qe,ke->qk"}> : () -> ()
    %cst_42 = arith.constant dense<0.000000e+00> : vector<8x8xf32>
    %126 = tpu.matmul %121, %123, %cst_42 {dimension_numbers = #tpu.dot_dimension_numbers<[1], [1], [0], [0], [0, 0, 1, 0], [], []>} : vector<8x16xbf16>, vector<8x16xbf16>, vector<8x8xf32> -> vector<8x8xf32>
    "tpu.trace_stop"() : () -> ()
    %cst_43 = arith.constant dense<0xFF800000> : vector<8xf32>
    %127 = vector.multi_reduction <maximumf>, %126, %cst_43 [1] : vector<8x8xf32> to vector<8xf32>
    %128 = vector.shape_cast %127 : vector<8xf32> to vector<8x1xf32>
    %129 = vector.broadcast %128 : vector<8x1xf32> to vector<8x8xf32>
    %130 = arith.subf %126, %129 : vector<8x8xf32>
    %131 = math.exp %130 : vector<8x8xf32>
    %cst_44 = arith.constant dense<0.000000e+00> : vector<8xf32>
    %132 = vector.multi_reduction <add>, %131, %cst_44 [1] : vector<8x8xf32> to vector<8xf32>
    %133 = vector.shape_cast %132 : vector<8xf32> to vector<8x1xf32>
    %134 = vector.broadcast %133 : vector<8x1xf32> to vector<8x8xf32>
    %135 = arith.divf %131, %134 : vector<8x8xf32>
    %136 = arith.truncf %135 : vector<8x8xf32> to vector<8x8xbf16>
    %cst_45 = arith.constant dense<0.000000e+00> : vector<8x16xf32>
    %137 = tpu.matmul %136, %125, %cst_45 {dimension_numbers = #tpu.dot_dimension_numbers<[1], [0], [0], [1], [0, 0, 1, 1], [], []>} : vector<8x8xbf16>, vector<8x16xbf16>, vector<8x16xf32> -> vector<8x16xf32>
    %138 = vector.extract_strided_slice %7 {offsets = [0, 96], sizes = [8, 16], strides = [1, 1]} : vector<8x128xf32> to vector<8x16xf32>
    %cst_46 = arith.constant 2.500000e-01 : f32
    %139 = vector.broadcast %cst_46 : f32 to vector<8x16xf32>
    %140 = arith.mulf %138, %139 : vector<8x16xf32>
    %141 = arith.truncf %140 : vector<8x16xf32> to vector<8x16xbf16>
    %142 = vector.extract_strided_slice %12 {offsets = [0, 96], sizes = [8, 16], strides = [1, 1]} : vector<8x128xf32> to vector<8x16xf32>
    %143 = arith.truncf %142 : vector<8x16xf32> to vector<8x16xbf16>
    %144 = vector.extract_strided_slice %17 {offsets = [0, 96], sizes = [8, 16], strides = [1, 1]} : vector<8x128xf32> to vector<8x16xf32>
    %145 = arith.truncf %144 : vector<8x16xf32> to vector<8x16xbf16>
    "tpu.trace_start"() <{level = 10 : i32, message = "qe,ke->qk"}> : () -> ()
    %cst_47 = arith.constant dense<0.000000e+00> : vector<8x8xf32>
    %146 = tpu.matmul %141, %143, %cst_47 {dimension_numbers = #tpu.dot_dimension_numbers<[1], [1], [0], [0], [0, 0, 1, 0], [], []>} : vector<8x16xbf16>, vector<8x16xbf16>, vector<8x8xf32> -> vector<8x8xf32>
    "tpu.trace_stop"() : () -> ()
    %cst_48 = arith.constant dense<0xFF800000> : vector<8xf32>
    %147 = vector.multi_reduction <maximumf>, %146, %cst_48 [1] : vector<8x8xf32> to vector<8xf32>
    %148 = vector.shape_cast %147 : vector<8xf32> to vector<8x1xf32>
    %149 = vector.broadcast %148 : vector<8x1xf32> to vector<8x8xf32>
    %150 = arith.subf %146, %149 : vector<8x8xf32>
    %151 = math.exp %150 : vector<8x8xf32>
    %cst_49 = arith.constant dense<0.000000e+00> : vector<8xf32>
    %152 = vector.multi_reduction <add>, %151, %cst_49 [1] : vector<8x8xf32> to vector<8xf32>
    %153 = vector.shape_cast %152 : vector<8xf32> to vector<8x1xf32>
    %154 = vector.broadcast %153 : vector<8x1xf32> to vector<8x8xf32>
    %155 = arith.divf %151, %154 : vector<8x8xf32>
    %156 = arith.truncf %155 : vector<8x8xf32> to vector<8x8xbf16>
    %cst_50 = arith.constant dense<0.000000e+00> : vector<8x16xf32>
    %157 = tpu.matmul %156, %145, %cst_50 {dimension_numbers = #tpu.dot_dimension_numbers<[1], [0], [0], [1], [0, 0, 1, 1], [], []>} : vector<8x8xbf16>, vector<8x16xbf16>, vector<8x16xf32> -> vector<8x16xf32>
    %158 = vector.extract_strided_slice %7 {offsets = [0, 112], sizes = [8, 16], strides = [1, 1]} : vector<8x128xf32> to vector<8x16xf32>
    %cst_51 = arith.constant 2.500000e-01 : f32
    %159 = vector.broadcast %cst_51 : f32 to vector<8x16xf32>
    %160 = arith.mulf %158, %159 : vector<8x16xf32>
    %161 = arith.truncf %160 : vector<8x16xf32> to vector<8x16xbf16>
    %162 = vector.extract_strided_slice %12 {offsets = [0, 112], sizes = [8, 16], strides = [1, 1]} : vector<8x128xf32> to vector<8x16xf32>
    %163 = arith.truncf %162 : vector<8x16xf32> to vector<8x16xbf16>
    %164 = vector.extract_strided_slice %17 {offsets = [0, 112], sizes = [8, 16], strides = [1, 1]} : vector<8x128xf32> to vector<8x16xf32>
    %165 = arith.truncf %164 : vector<8x16xf32> to vector<8x16xbf16>
    "tpu.trace_start"() <{level = 10 : i32, message = "qe,ke->qk"}> : () -> ()
    %cst_52 = arith.constant dense<0.000000e+00> : vector<8x8xf32>
    %166 = tpu.matmul %161, %163, %cst_52 {dimension_numbers = #tpu.dot_dimension_numbers<[1], [1], [0], [0], [0, 0, 1, 0], [], []>} : vector<8x16xbf16>, vector<8x16xbf16>, vector<8x8xf32> -> vector<8x8xf32>
    "tpu.trace_stop"() : () -> ()
    %cst_53 = arith.constant dense<0xFF800000> : vector<8xf32>
    %167 = vector.multi_reduction <maximumf>, %166, %cst_53 [1] : vector<8x8xf32> to vector<8xf32>
    %168 = vector.shape_cast %167 : vector<8xf32> to vector<8x1xf32>
    %169 = vector.broadcast %168 : vector<8x1xf32> to vector<8x8xf32>
    %170 = arith.subf %166, %169 : vector<8x8xf32>
    %171 = math.exp %170 : vector<8x8xf32>
    %cst_54 = arith.constant dense<0.000000e+00> : vector<8xf32>
    %172 = vector.multi_reduction <add>, %171, %cst_54 [1] : vector<8x8xf32> to vector<8xf32>
    %173 = vector.shape_cast %172 : vector<8xf32> to vector<8x1xf32>
    %174 = vector.broadcast %173 : vector<8x1xf32> to vector<8x8xf32>
    %175 = arith.divf %171, %174 : vector<8x8xf32>
    %176 = arith.truncf %175 : vector<8x8xf32> to vector<8x8xbf16>
    %cst_55 = arith.constant dense<0.000000e+00> : vector<8x16xf32>
    %177 = tpu.matmul %176, %165, %cst_55 {dimension_numbers = #tpu.dot_dimension_numbers<[1], [0], [0], [1], [0, 0, 1, 1], [], []>} : vector<8x8xbf16>, vector<8x16xbf16>, vector<8x16xf32> -> vector<8x16xf32>
    %178 = tpu.concatenate %37, %57, %77, %97, %117, %137, %157, %177 in 1 : vector<8x16xf32>, vector<8x16xf32>, vector<8x16xf32>, vector<8x16xf32>, vector<8x16xf32>, vector<8x16xf32>, vector<8x16xf32>, vector<8x16xf32> -> vector<8x128xf32>
    %179 = arith.truncf %178 : vector<8x128xf32> to vector<8x128xbf16>
    %c0_56 = arith.constant 0 : index
    %c0_57 = arith.constant 0 : index
    %180 = vector.load %arg8[%c0_56, %c0_57] : memref<128x128xbf16, #tpu.memory_space<vmem>>, vector<128x128xbf16>
    %cst_58 = arith.constant dense<0.000000e+00> : vector<8x128xf32>
    %181 = tpu.matmul %179, %180, %cst_58 {dimension_numbers = #tpu.dot_dimension_numbers<[1], [0], [0], [1], [0, 0, 1, 1], [], []>} : vector<8x128xbf16>, vector<128x128xbf16>, vector<8x128xf32> -> vector<8x128xf32>
    %c0_59 = arith.constant 0 : index
    %c0_60 = arith.constant 0 : index
    %182 = vector.load %arg9[%c0_59, %c0_60] : memref<1x128xf32, #tpu.memory_space<vmem>>, vector<1x128xf32>
    %183 = vector.broadcast %182 : vector<1x128xf32> to vector<8x128xf32>
    %184 = arith.addf %181, %183 : vector<8x128xf32>
    %185 = arith.addf %1, %184 : vector<8x128xf32>
    %c0_61 = arith.constant 0 : index
    %c0_62 = arith.constant 0 : index
    %186 = vector.load %arg10[%c0_61, %c0_62] : memref<1x128xf32, #tpu.memory_space<vmem>>, vector<1x128xf32>
    %c0_63 = arith.constant 0 : index
    %c0_64 = arith.constant 0 : index
    %187 = vector.load %arg11[%c0_63, %c0_64] : memref<1x128xf32, #tpu.memory_space<vmem>>, vector<1x128xf32>
    %cst_65 = arith.constant dense<0.000000e+00> : vector<8xf32>
    %188 = vector.multi_reduction <add>, %185, %cst_65 [1] : vector<8x128xf32> to vector<8xf32>
    %189 = vector.shape_cast %188 : vector<8xf32> to vector<8x1xf32>
    %cst_66 = arith.constant 1.280000e+02 : f32
    %190 = vector.broadcast %cst_66 : f32 to vector<8x1xf32>
    %191 = arith.divf %189, %190 : vector<8x1xf32>
    %192 = vector.broadcast %191 : vector<8x1xf32> to vector<8x128xf32>
    %193 = arith.subf %185, %192 : vector<8x128xf32>
    %194 = arith.mulf %193, %193 : vector<8x128xf32>
    %cst_67 = arith.constant dense<0.000000e+00> : vector<8xf32>
    %195 = vector.multi_reduction <add>, %194, %cst_67 [1] : vector<8x128xf32> to vector<8xf32>
    %196 = vector.shape_cast %195 : vector<8xf32> to vector<8x1xf32>
    %cst_68 = arith.constant 1.280000e+02 : f32
    %197 = vector.broadcast %cst_68 : f32 to vector<8x1xf32>
    %198 = arith.divf %196, %197 : vector<8x1xf32>
    %199 = vector.broadcast %191 : vector<8x1xf32> to vector<8x128xf32>
    %200 = arith.subf %185, %199 : vector<8x128xf32>
    %cst_69 = arith.constant 9.99999974E-6 : f32
    %201 = vector.broadcast %cst_69 : f32 to vector<8x1xf32>
    %202 = arith.addf %198, %201 : vector<8x1xf32>
    %203 = math.rsqrt %202 : vector<8x1xf32>
    %204 = vector.broadcast %203 : vector<8x1xf32> to vector<8x128xf32>
    %205 = arith.mulf %200, %204 : vector<8x128xf32>
    %206 = vector.broadcast %186 : vector<1x128xf32> to vector<8x128xf32>
    %207 = arith.mulf %205, %206 : vector<8x128xf32>
    %208 = vector.broadcast %187 : vector<1x128xf32> to vector<8x128xf32>
    %209 = arith.addf %207, %208 : vector<8x128xf32>
    %c0_70 = arith.constant 0 : index
    %c0_71 = arith.constant 0 : index
    %c0_72 = arith.constant 0 : index
    %210 = vector.load %arg12[%c0_70, %c0_71, %c0_72] : memref<1x8x128xf32, #tpu.memory_space<vmem>>, vector<1x8x128xf32>
    %211 = vector.shape_cast %210 : vector<1x8x128xf32> to vector<8x128xf32>
    %212 = vector.shape_cast %209 : vector<8x128xf32> to vector<1x8x128xf32>
    tpu.vector_store %arg12[%c0_70, %c0_71, %c0_72], %212 {strides = array<i32>} : memref<1x8x128xf32, #tpu.memory_space<vmem>>, vector<1x8x128xf32>,
    %213 = arith.truncf %209 : vector<8x128xf32> to vector<8x128xbf16>
    %c0_73 = arith.constant 0 : index
    %c0_74 = arith.constant 0 : index
    %c0_75 = arith.constant 0 : index
    %214 = vector.load %arg13[%c0_73, %c0_74, %c0_75] : memref<1x8x128xbf16, #tpu.memory_space<vmem>>, vector<1x8x128xbf16>
    %215 = vector.shape_cast %214 : vector<1x8x128xbf16> to vector<8x128xbf16>
    %216 = vector.shape_cast %213 : vector<8x128xbf16> to vector<1x8x128xbf16>
    tpu.vector_store %arg13[%c0_73, %c0_74, %c0_75], %216 {strides = array<i32>} : memref<1x8x128xbf16, #tpu.memory_space<vmem>>, vector<1x8x128xbf16>,
    return
  }
  func.func @transform_0(%arg0: i32) -> (i32, i32, i32) {
    %c0_i32 = arith.constant 0 : i32
    %c0_i32_0 = arith.constant 0 : i32
    %c0_i32_1 = arith.constant 0 : i32
    return %arg0, %c0_i32, %c0_i32_0 : i32, i32, i32
  }
  func.func @transform_1(%arg0: i32) -> (i32, i32) {
    %c0_i32 = arith.constant 0 : i32
    %c0_i32_0 = arith.constant 0 : i32
    %c0_i32_1 = arith.constant 0 : i32
    return %c0_i32, %c0_i32_0 : i32, i32
  }
  func.func @transform_2(%arg0: i32) -> (i32, i32) {
    %c0_i32 = arith.constant 0 : i32
    %c0_i32_0 = arith.constant 0 : i32
    %c0_i32_1 = arith.constant 0 : i32
    return %c0_i32, %c0_i32_0 : i32, i32
  }
  func.func @transform_3(%arg0: i32) -> (i32, i32) {
    %c0_i32 = arith.constant 0 : i32
    %c0_i32_0 = arith.constant 0 : i32
    %c0_i32_1 = arith.constant 0 : i32
    return %c0_i32, %c0_i32_0 : i32, i32
  }
  func.func @transform_4(%arg0: i32) -> (i32, i32) {
    %c0_i32 = arith.constant 0 : i32
    %c0_i32_0 = arith.constant 0 : i32
    %c0_i32_1 = arith.constant 0 : i32
    return %c0_i32, %c0_i32_0 : i32, i32
  }
  func.func @transform_5(%arg0: i32) -> (i32, i32) {
    %c0_i32 = arith.constant 0 : i32
    %c0_i32_0 = arith.constant 0 : i32
    %c0_i32_1 = arith.constant 0 : i32
    return %c0_i32, %c0_i32_0 : i32, i32
  }
  func.func @transform_6(%arg0: i32) -> (i32, i32) {
    %c0_i32 = arith.constant 0 : i32
    %c0_i32_0 = arith.constant 0 : i32
    %c0_i32_1 = arith.constant 0 : i32
    return %c0_i32, %c0_i32_0 : i32, i32
  }
  func.func @transform_7(%arg0: i32) -> (i32, i32) {
    %c0_i32 = arith.constant 0 : i32
    %c0_i32_0 = arith.constant 0 : i32
    %c0_i32_1 = arith.constant 0 : i32
    return %c0_i32, %c0_i32_0 : i32, i32
  }
  func.func @transform_8(%arg0: i32) -> (i32, i32) {
    %c0_i32 = arith.constant 0 : i32
    %c0_i32_0 = arith.constant 0 : i32
    %c0_i32_1 = arith.constant 0 : i32
    return %c0_i32, %c0_i32_0 : i32, i32
  }
  func.func @transform_9(%arg0: i32) -> (i32, i32) {
    %c0_i32 = arith.constant 0 : i32
    %c0_i32_0 = arith.constant 0 : i32
    %c0_i32_1 = arith.constant 0 : i32
    return %c0_i32, %c0_i32_0 : i32, i32
  }
  func.func @transform_10(%arg0: i32) -> (i32, i32) {
    %c0_i32 = arith.constant 0 : i32
    %c0_i32_0 = arith.constant 0 : i32
    %c0_i32_1 = arith.constant 0 : i32
    return %c0_i32, %c0_i32_0 : i32, i32
  }
  func.func @transform_11(%arg0: i32) -> (i32, i32, i32) {
    %c0_i32 = arith.constant 0 : i32
    %c0_i32_0 = arith.constant 0 : i32
    %c0_i32_1 = arith.constant 0 : i32
    return %arg0, %c0_i32, %c0_i32_0 : i32, i32, i32
  }
  func.func @transform_12(%arg0: i32) -> (i32, i32, i32) {
    %c0_i32 = arith.constant 0 : i32
    %c0_i32_0 = arith.constant 0 : i32
    %c0_i32_1 = arith.constant 0 : i32
    return %arg0, %c0_i32, %c0_i32_0 : i32, i32, i32
  }
}

</mosaic_0001>

<llo_original>
// kernel: tpu_custom_call.1
$region0: #{tpu_custom_call.1}
  #allocation0 [shape = 'u32[]', space=smem, size = 0x4, offset = 0x4, fixed_abs, tag = 'smem constant byte address 0x4 - core index']
  #allocation1 [shape = 'u32[72,128]{1,0:T(1,128)}', space=vmem, size = 0x9000, scoped, tag = 'internal scratch']
  %s0 = inlined_call_operand.hbm [shape: f32[2,8,128], index: 0, kind: input, shape index: {}]
  %s1 = inlined_call_operand.hbm [shape: bf16[128,128], index: 1, kind: input, shape index: {}]
  %s2 = inlined_call_operand.vmem [shape: f32[1,128], index: 2, kind: input, shape index: {}]
  %s3 = inlined_call_operand.hbm [shape: bf16[128,128], index: 3, kind: input, shape index: {}]
  %s4 = inlined_call_operand.vmem [shape: f32[1,128], index: 4, kind: input, shape index: {}]
  %s5 = inlined_call_operand.hbm [shape: bf16[128,128], index: 5, kind: input, shape index: {}]
  %s6 = inlined_call_operand.vmem [shape: f32[1,128], index: 6, kind: input, shape index: {}]
  %s7 = inlined_call_operand.hbm [shape: bf16[128,128], index: 7, kind: input, shape index: {}]
  %s8 = inlined_call_operand.vmem [shape: f32[1,128], index: 8, kind: input, shape index: {}]
  %s9 = inlined_call_operand.vmem [shape: f32[1,128], index: 9, kind: input, shape index: {}]
  %s10 = inlined_call_operand.vmem [shape: f32[1,128], index: 10, kind: input, shape index: {}]
  %s11 = inlined_call_operand.hbm [shape: f32[2,8,128], index: 11, kind: output, shape index: {0}]
  %s12 = inlined_call_operand.hbm [shape: bf16[2,8,128], index: 12, kind: output, shape index: {1}]
  %13 = xla_tuple %s11, %s12
  %s14 = sld [smem:[#allocation0]]
  $region105: #{tpu_custom_call.1} parent=0
    _
  %s16 = ssub.s32 1, %s14
  %s17 = scalar_select 0, %s16, %s14
  $region1: #{tpu_custom_call.1} parent=0
    #allocation2 [shape = 'u8[8192]{0}', space=vmem, size = 0x2000, scoped, tag = 'input window, operand 0']
    #allocation3 [shape = 's32[2]{0}', space=sflag, size = 0x8, scoped, tag = 'scoped memory for tpu_custom_call.1']
    #allocation4 [shape = 's32[2]{0}', space=sflag, size = 0x8, scoped, tag = 'scoped memory for tpu_custom_call.1']
    #allocation5 [shape = 'u8[32768]{0}', space=vmem, size = 0x8000, scoped, tag = 'input window, operand 1, single buffered']
    #allocation6 [shape = 's32[1]{0}', space=sflag, size = 0x4, scoped, tag = 'scoped memory for tpu_custom_call.1']
    #allocation7 [shape = 'u8[32768]{0}', space=vmem, size = 0x8000, scoped, tag = 'input window, operand 3, single buffered']
    #allocation8 [shape = 'u8[32768]{0}', space=vmem, size = 0x8000, scoped, tag = 'input window, operand 5, single buffered']
    #allocation9 [shape = 's32[1]{0}', space=sflag, size = 0x4, scoped, tag = 'scoped memory for tpu_custom_call.1']
    #allocation10 [shape = 'u8[32768]{0}', space=vmem, size = 0x8000, scoped, tag = 'input window, operand 7, single buffered']
    #allocation11 [shape = 'u8[8192]{0}', space=vmem, size = 0x2000, scoped, tag = 'output window, operand 0']
    #allocation12 [shape = 'u8[4096]{0}', space=vmem, size = 0x1000, scoped, tag = 'output window, operand 1']
    #allocation13 [shape = 's32[2]{0}', space=sflag, size = 0x8, scoped, tag = 'scoped memory for tpu_custom_call.1']
    %18 = vsyncpa [#allocation3], 0
    %s19 = scalar_lea.sflag [#allocation3], 1
    %20 = vsyncpa %s19, 0
    %21 = vsyncpa [#allocation6], 0
    %22 = vsyncpa [#allocation9], 0
    %23 = vsyncpa [#allocation4], 0
    %s24 = scalar_lea.sflag [#allocation4], 1
    %25 = vsyncpa %s24, 0
    %26 = vsyncpa [#allocation13], 0
    %s27 = scalar_lea.sflag [#allocation13], 1
    %28 = vsyncpa %s27, 0
    loop: start=0, step=1, limit=4
    $region2: #{tpu_custom_call.1} parent=1 // loop_pre_header
      _
    $region3: #{tpu_custom_call.1} parent=1 // loop_header
      %s30 = sphi 0, %s34
      %p31 = scmp.ge.s32.totalorder %s30, 4
      %s40 = sphi 0, %s42
      %s43 = sphi 0, %s40
      %s44 = sphi 0, %s43
      %s60 = sphi 0, %s44
      %s64 = sphi 0, %s64
      %s66 = sphi 0, %s64
      %s67 = sphi 0, %s66
      %s81 = sphi 0, %s67
      %s85 = sphi 0, %s85
      %s87 = sphi 0, %s85
      %s88 = sphi 0, %s87
      %s102 = sphi 0, %s88
      %s106 = sphi 0, %s106
      %s108 = sphi 0, %s106
      %s109 = sphi 0, %s108
      %s123 = sphi 0, %s109
      %s127 = sphi 0, %s127
      %s129 = sphi 0, %s127
      %s130 = sphi 0, %s129
      %s144 = sphi 0, %s130
      %s148 = sphi 0, %s148
      %s150 = sphi 0, %s148
      %s151 = sphi 0, %s150
      %s165 = sphi 0, %s151
      %s169 = sphi 0, %s169
      %s171 = sphi 0, %s169
      %s172 = sphi 0, %s171
      %s186 = sphi 0, %s172
      %s190 = sphi 0, %s190
      %s192 = sphi 0, %s190
      %s193 = sphi 0, %s192
      %s207 = sphi 0, %s193
      %s211 = sphi 0, %s211
      %s213 = sphi 0, %s211
      %s214 = sphi 0, %s213
      %s228 = sphi 0, %s214
      %s232 = sphi 0, %s232
      %s234 = sphi 0, %s232
      %s235 = sphi 0, %s234
      %s249 = sphi 0, %s235
      %s253 = sphi 0, %s253
      %s255 = sphi 0, %s253
      %s256 = sphi 0, %s255
      %s270 = sphi 0, %s256
      %s276 = sphi 0, %s278
      %s279 = sphi 0, %s276
      %s280 = sphi 0, %s279
      %s296 = sphi 0, %s280
      %s302 = sphi 0, %s304
      %s305 = sphi 0, %s302
      %s306 = sphi 0, %s305
      %s322 = sphi 0, %s306
    $region4: #{tpu_custom_call.1} parent=1 // loop_header_branch
      %33 = sbr.rel (%p31) target = $region8
    $region5: #{tpu_custom_call.1} parent=1 // loop_body
      %s35 = ssub.s32 %s30, 1
      %s36 = ssub.s32 %s30, 2
      %s37 = sadd.s32 %s30, 1
      %s38 = ssub.s32 %s30, %s37
      %p39 = scmp.eq.s32.totalorder %s38, 0
      %s41 = sadd.s32 %s40, 1
      %s42 = scalar_select %p39, %s40, %s41
      %p45 = pneg %p39
      %p46 = scmp.eq.s32.totalorder %s30, 1
      %p47 = por %p45, %p46
      %p48 = scmp.ne.s32.totalorder %s40, %s43
      %p49 = scmp.eq.s32.totalorder %s30, 0
      %p50 = por %p48, %p49
      %p51 = scmp.ne.s32.totalorder %s40, %s43
      %p52 = scmp.eq.s32.totalorder %s35, 1
      %p53 = por %p51, %p52
      %p54 = scmp.ne.s32.totalorder %s43, %s44
      %p55 = scmp.eq.s32.totalorder %s35, 0
      %p56 = por %p54, %p55
      %p57 = scmp.ne.s32.totalorder %s43, %s44
      %p58 = scmp.eq.s32.totalorder %s36, 1
      %p59 = por %p57, %p58
      %p61 = scmp.ne.s32.totalorder %s44, %s60
      %p62 = scmp.eq.s32.totalorder %s36, 0
      %p63 = por %p61, %p62
      %s65 = sadd.s32 %s64, 1
      %p68 = scmp.eq.s32.totalorder %s30, 1
      %p69 = scmp.ne.s32.totalorder %s64, %s66
      %p70 = scmp.eq.s32.totalorder %s30, 0
      %p71 = por %p69, %p70
      %p72 = scmp.ne.s32.totalorder %s64, %s66
      %p73 = scmp.eq.s32.totalorder %s35, 1
      %p74 = por %p72, %p73
      %p75 = scmp.ne.s32.totalorder %s66, %s67
      %p76 = scmp.eq.s32.totalorder %s35, 0
      %p77 = por %p75, %p76
      %p78 = scmp.ne.s32.totalorder %s66, %s67
      %p79 = scmp.eq.s32.totalorder %s36, 1
      %p80 = por %p78, %p79
      %p82 = scmp.ne.s32.totalorder %s67, %s81
      %p83 = scmp.eq.s32.totalorder %s36, 0
      %p84 = por %p82, %p83
      %s86 = sadd.s32 %s85, 1
      %p89 = scmp.eq.s32.totalorder %s30, 1
      %p90 = scmp.ne.s32.totalorder %s85, %s87
      %p91 = scmp.eq.s32.totalorder %s30, 0
      %p92 = por %p90, %p91
      %p93 = scmp.ne.s32.totalorder %s85, %s87
      %p94 = scmp.eq.s32.totalorder %s35, 1
      %p95 = por %p93, %p94
      %p96 = scmp.ne.s32.totalorder %s87, %s88
      %p97 = scmp.eq.s32.totalorder %s35, 0
      %p98 = por %p96, %p97
      %p99 = scmp.ne.s32.totalorder %s87, %s88
      %p100 = scmp.eq.s32.totalorder %s36, 1
      %p101 = por %p99, %p100
      %p103 = scmp.ne.s32.totalorder %s88, %s102
      %p104 = scmp.eq.s32.totalorder %s36, 0
      %p105 = por %p103, %p104
      %s107 = sadd.s32 %s106, 1
      %p110 = scmp.eq.s32.totalorder %s30, 1
      %p111 = scmp.ne.s32.totalorder %s106, %s108
      %p112 = scmp.eq.s32.totalorder %s30, 0
      %p113 = por %p111, %p112
      %p114 = scmp.ne.s32.totalorder %s106, %s108
      %p115 = scmp.eq.s32.totalorder %s35, 1
      %p116 = por %p114, %p115
      %p117 = scmp.ne.s32.totalorder %s108, %s109
      %p118 = scmp.eq.s32.totalorder %s35, 0
      %p119 = por %p117, %p118
      %p120 = scmp.ne.s32.totalorder %s108, %s109
      %p121 = scmp.eq.s32.totalorder %s36, 1
      %p122 = por %p120, %p121
      %p124 = scmp.ne.s32.totalorder %s109, %s123
      %p125 = scmp.eq.s32.totalorder %s36, 0
      %p126 = por %p124, %p125
      %s128 = sadd.s32 %s127, 1
      %p131 = scmp.eq.s32.totalorder %s30, 1
      %p132 = scmp.ne.s32.totalorder %s127, %s129
      %p133 = scmp.eq.s32.totalorder %s30, 0
      %p134 = por %p132, %p133
      %p135 = scmp.ne.s32.totalorder %s127, %s129
      %p136 = scmp.eq.s32.totalorder %s35, 1
      %p137 = por %p135, %p136
      %p138 = scmp.ne.s32.totalorder %s129, %s130
      %p139 = scmp.eq.s32.totalorder %s35, 0
      %p140 = por %p138, %p139
      %p141 = scmp.ne.s32.totalorder %s129, %s130
      %p142 = scmp.eq.s32.totalorder %s36, 1
      %p143 = por %p141, %p142
      %p145 = scmp.ne.s32.totalorder %s130, %s144
      %p146 = scmp.eq.s32.totalorder %s36, 0
      %p147 = por %p145, %p146
      %s149 = sadd.s32 %s148, 1
      %p152 = scmp.eq.s32.totalorder %s30, 1
      %p153 = scmp.ne.s32.totalorder %s148, %s150
      %p154 = scmp.eq.s32.totalorder %s30, 0
      %p155 = por %p153, %p154
      %p156 = scmp.ne.s32.totalorder %s148, %s150
      %p157 = scmp.eq.s32.totalorder %s35, 1
      %p158 = por %p156, %p157
      %p159 = scmp.ne.s32.totalorder %s150, %s151
      %p160 = scmp.eq.s32.totalorder %s35, 0
      %p161 = por %p159, %p160
      %p162 = scmp.ne.s32.totalorder %s150, %s151
      %p163 = scmp.eq.s32.totalorder %s36, 1
      %p164 = por %p162, %p163
      %p166 = scmp.ne.s32.totalorder %s151, %s165
      %p167 = scmp.eq.s32.totalorder %s36, 0
      %p168 = por %p166, %p167
      %s170 = sadd.s32 %s169, 1
      %p173 = scmp.eq.s32.totalorder %s30, 1
      %p174 = scmp.ne.s32.totalorder %s169, %s171
      %p175 = scmp.eq.s32.totalorder %s30, 0
      %p176 = por %p174, %p175
      %p177 = scmp.ne.s32.totalorder %s169, %s171
      %p178 = scmp.eq.s32.totalorder %s35, 1
      %p179 = por %p177, %p178
      %p180 = scmp.ne.s32.totalorder %s171, %s172
      %p181 = scmp.eq.s32.totalorder %s35, 0
      %p182 = por %p180, %p181
      %p183 = scmp.ne.s32.totalorder %s171, %s172
      %p184 = scmp.eq.s32.totalorder %s36, 1
      %p185 = por %p183, %p184
      %p187 = scmp.ne.s32.totalorder %s172, %s186
      %p188 = scmp.eq.s32.totalorder %s36, 0
      %p189 = por %p187, %p188
      %s191 = sadd.s32 %s190, 1
      %p194 = scmp.eq.s32.totalorder %s30, 1
      %p195 = scmp.ne.s32.totalorder %s190, %s192
      %p196 = scmp.eq.s32.totalorder %s30, 0
      %p197 = por %p195, %p196
      %p198 = scmp.ne.s32.totalorder %s190, %s192
      %p199 = scmp.eq.s32.totalorder %s35, 1
      %p200 = por %p198, %p199
      %p201 = scmp.ne.s32.totalorder %s192, %s193
      %p202 = scmp.eq.s32.totalorder %s35, 0
      %p203 = por %p201, %p202
      %p204 = scmp.ne.s32.totalorder %s192, %s193
      %p205 = scmp.eq.s32.totalorder %s36, 1
      %p206 = por %p204, %p205
      %p208 = scmp.ne.s32.totalorder %s193, %s207
      %p209 = scmp.eq.s32.totalorder %s36, 0
      %p210 = por %p208, %p209
      %s212 = sadd.s32 %s211, 1
      %p215 = scmp.eq.s32.totalorder %s30, 1
      %p216 = scmp.ne.s32.totalorder %s211, %s213
      %p217 = scmp.eq.s32.totalorder %s30, 0
      %p218 = por %p216, %p217
      %p219 = scmp.ne.s32.totalorder %s211, %s213
      %p220 = scmp.eq.s32.totalorder %s35, 1
      %p221 = por %p219, %p220
      %p222 = scmp.ne.s32.totalorder %s213, %s214
      %p223 = scmp.eq.s32.totalorder %s35, 0
      %p224 = por %p222, %p223
      %p225 = scmp.ne.s32.totalorder %s213, %s214
      %p226 = scmp.eq.s32.totalorder %s36, 1
      %p227 = por %p225, %p226
      %p229 = scmp.ne.s32.totalorder %s214, %s228
      %p230 = scmp.eq.s32.totalorder %s36, 0
      %p231 = por %p229, %p230
      %s233 = sadd.s32 %s232, 1
      %p236 = scmp.eq.s32.totalorder %s30, 1
      %p237 = scmp.ne.s32.totalorder %s232, %s234
      %p238 = scmp.eq.s32.totalorder %s30, 0
      %p239 = por %p237, %p238
      %p240 = scmp.ne.s32.totalorder %s232, %s234
      %p241 = scmp.eq.s32.totalorder %s35, 1
      %p242 = por %p240, %p241
      %p243 = scmp.ne.s32.totalorder %s234, %s235
      %p244 = scmp.eq.s32.totalorder %s35, 0
      %p245 = por %p243, %p244
      %p246 = scmp.ne.s32.totalorder %s234, %s235
      %p247 = scmp.eq.s32.totalorder %s36, 1
      %p248 = por %p246, %p247
      %p250 = scmp.ne.s32.totalorder %s235, %s249
      %p251 = scmp.eq.s32.totalorder %s36, 0
      %p252 = por %p250, %p251
      %s254 = sadd.s32 %s253, 1
      %p257 = scmp.eq.s32.totalorder %s30, 1
      %p258 = scmp.ne.s32.totalorder %s253, %s255
      %p259 = scmp.eq.s32.totalorder %s30, 0
      %p260 = por %p258, %p259
      %p261 = scmp.ne.s32.totalorder %s253, %s255
      %p262 = scmp.eq.s32.totalorder %s35, 1
      %p263 = por %p261, %p262
      %p264 = scmp.ne.s32.totalorder %s255, %s256
      %p265 = scmp.eq.s32.totalorder %s35, 0
      %p266 = por %p264, %p265
      %p267 = scmp.ne.s32.totalorder %s255, %s256
      %p268 = scmp.eq.s32.totalorder %s36, 1
      %p269 = por %p267, %p268
      %p271 = scmp.ne.s32.totalorder %s256, %s270
      %p272 = scmp.eq.s32.totalorder %s36, 0
      %p273 = por %p271, %p272
      %s274 = ssub.s32 %s30, %s37
      %p275 = scmp.eq.s32.totalorder %s274, 0
      %s277 = sadd.s32 %s276, 1
      %s278 = scalar_select %p275, %s276, %s277
      %p281 = pneg %p275
      %p282 = scmp.eq.s32.totalorder %s30, 1
      %p283 = por %p281, %p282
      %p284 = scmp.ne.s32.totalorder %s276, %s279
      %p285 = scmp.eq.s32.totalorder %s30, 0
      %p286 = por %p284, %p285
      %p287 = scmp.ne.s32.totalorder %s276, %s279
      %p288 = scmp.eq.s32.totalorder %s35, 1
      %p289 = por %p287, %p288
      %p290 = scmp.ne.s32.totalorder %s279, %s280
      %p291 = scmp.eq.s32.totalorder %s35, 0
      %p292 = por %p290, %p291
      %p293 = scmp.ne.s32.totalorder %s279, %s280
      %p294 = scmp.eq.s32.totalorder %s36, 1
      %p295 = por %p293, %p294
      %p297 = scmp.ne.s32.totalorder %s280, %s296
      %p298 = scmp.eq.s32.totalorder %s36, 0
      %p299 = por %p297, %p298
      %s300 = ssub.s32 %s30, %s37
      %p301 = scmp.eq.s32.totalorder %s300, 0
      %s303 = sadd.s32 %s302, 1
      %s304 = scalar_select %p301, %s302, %s303
      %p307 = pneg %p301
      %p308 = scmp.eq.s32.totalorder %s30, 1
      %p309 = por %p307, %p308
      %p310 = scmp.ne.s32.totalorder %s302, %s305
      %p311 = scmp.eq.s32.totalorder %s30, 0
      %p312 = por %p310, %p311
      %p313 = scmp.ne.s32.totalorder %s302, %s305
      %p314 = scmp.eq.s32.totalorder %s35, 1
      %p315 = por %p313, %p314
      %p316 = scmp.ne.s32.totalorder %s305, %s306
      %p317 = scmp.eq.s32.totalorder %s35, 0
      %p318 = por %p316, %p317
      %p319 = scmp.ne.s32.totalorder %s305, %s306
      %p320 = scmp.eq.s32.totalorder %s36, 1
      %p321 = por %p319, %p320
      %p323 = scmp.ne.s32.totalorder %s306, %s322
      %p324 = scmp.eq.s32.totalorder %s36, 0
      %p325 = por %p323, %p324
      %p326 = scmp.le.s32.totalorder 1, %s30
      %p327 = scmp.lt.s32.totalorder %s30, 3
      %p328 = pnand %p326, %p327
      %p329 = pneg %p328
      // Predicated region
      $region9: #{tpu_custom_call.1} parent=5 // pred_check
        _
      $region10: #{tpu_custom_call.1} parent=5 // pred_check_branch
        %331 = sbr.rel (%p328) target = $region12
      $region11: #{tpu_custom_call.1} parent=5 // pred_region
        %s332 = ssub.s32 %s30, 1
        // Predicated region
        $region13: #{tpu_custom_call.1} parent=11 // pred_check
          %p333 = pneg %p77
        $region14: #{tpu_custom_call.1} parent=11 // pred_check_branch
          %335 = sbr.rel (%p333) target = $region16
        $region15: #{tpu_custom_call.1} parent=11 // pred_region
          %337 = vsyncadd [#allocation6], 0
          %s338 = sshll.u32 %s1, 4
          %s339 = int_to_ptr.hbm [resolvable:$true] %s338
          %s340 = sshll.u32 [#allocation5], 4
          %s341 = int_to_ptr.vmem [resolvable:$true] %s340
          %346 = dma.hbm_to_vmem [thread:$0]  %s339, 1024, %s341, [#allocation6], 64, 64, 4
        $region16: #{tpu_custom_call.1} parent=11 // pred_fallthru
          _
        // Predicated region
        $region17: #{tpu_custom_call.1} parent=11 // pred_check
          %p347 = pneg %p98
        $region18: #{tpu_custom_call.1} parent=11 // pred_check_branch
          %349 = sbr.rel (%p347) target = $region20
        $region19: #{tpu_custom_call.1} parent=11 // pred_region
          _
        $region20: #{tpu_custom_call.1} parent=11 // pred_fallthru
          _
        // Predicated region
        $region21: #{tpu_custom_call.1} parent=11 // pred_check
          %p350 = pneg %p119
        $region22: #{tpu_custom_call.1} parent=11 // pred_check_branch
          %352 = sbr.rel (%p350) target = $region24
        $region23: #{tpu_custom_call.1} parent=11 // pred_region
          %354 = vsyncadd [#allocation6], 0
          %s355 = sshll.u32 %s3, 4
          %s356 = int_to_ptr.hbm [resolvable:$true] %s355
          %s357 = sshll.u32 [#allocation7], 4
          %s358 = int_to_ptr.vmem [resolvable:$true] %s357
          %363 = dma.hbm_to_vmem [thread:$0]  %s356, 1024, %s358, [#allocation6], 64, 64, 4
        $region24: #{tpu_custom_call.1} parent=11 // pred_fallthru
          _
        // Predicated region
        $region25: #{tpu_custom_call.1} parent=11 // pred_check
          %p364 = pneg %p140
        $region26: #{tpu_custom_call.1} parent=11 // pred_check_branch
          %366 = sbr.rel (%p364) target = $region28
        $region27: #{tpu_custom_call.1} parent=11 // pred_region
          _
        $region28: #{tpu_custom_call.1} parent=11 // pred_fallthru
          _
        // Predicated region
        $region29: #{tpu_custom_call.1} parent=11 // pred_check
          %p367 = pneg %p161
        $region30: #{tpu_custom_call.1} parent=11 // pred_check_branch
          %369 = sbr.rel (%p367) target = $region32
        $region31: #{tpu_custom_call.1} parent=11 // pred_region
          %371 = vsyncadd [#allocation9], 0
          %s372 = sshll.u32 %s5, 4
          %s373 = int_to_ptr.hbm [resolvable:$true] %s372
          %s374 = sshll.u32 [#allocation8], 4
          %s375 = int_to_ptr.vmem [resolvable:$true] %s374
          %380 = dma.hbm_to_vmem [thread:$0]  %s373, 1024, %s375, [#allocation9], 64, 64, 4
        $region32: #{tpu_custom_call.1} parent=11 // pred_fallthru
          _
        // Predicated region
        $region33: #{tpu_custom_call.1} parent=11 // pred_check
          %p381 = pneg %p182
        $region34: #{tpu_custom_call.1} parent=11 // pred_check_branch
          %383 = sbr.rel (%p381) target = $region36
        $region35: #{tpu_custom_call.1} parent=11 // pred_region
          _
        $region36: #{tpu_custom_call.1} parent=11 // pred_fallthru
          _
        // Predicated region
        $region37: #{tpu_custom_call.1} parent=11 // pred_check
          %p384 = pneg %p203
        $region38: #{tpu_custom_call.1} parent=11 // pred_check_branch
          %386 = sbr.rel (%p384) target = $region40
        $region39: #{tpu_custom_call.1} parent=11 // pred_region
          %388 = vsyncadd [#allocation9], 0
          %s389 = sshll.u32 %s7, 4
          %s390 = int_to_ptr.hbm [resolvable:$true] %s389
          %s391 = sshll.u32 [#allocation10], 4
          %s392 = int_to_ptr.vmem [resolvable:$true] %s391
          %397 = dma.hbm_to_vmem [thread:$0]  %s390, 1024, %s392, [#allocation9], 64, 64, 4
        $region40: #{tpu_custom_call.1} parent=11 // pred_fallthru
          _
        // Predicated region
        $region41: #{tpu_custom_call.1} parent=11 // pred_check
          %p398 = pneg %p224
        $region42: #{tpu_custom_call.1} parent=11 // pred_check_branch
          %400 = sbr.rel (%p398) target = $region44
        $region43: #{tpu_custom_call.1} parent=11 // pred_region
          _
        $region44: #{tpu_custom_call.1} parent=11 // pred_fallthru
          _
        // Predicated region
        $region45: #{tpu_custom_call.1} parent=11 // pred_check
          %p401 = pneg %p245
        $region46: #{tpu_custom_call.1} parent=11 // pred_check_branch
          %403 = sbr.rel (%p401) target = $region48
        $region47: #{tpu_custom_call.1} parent=11 // pred_region
          _
        $region48: #{tpu_custom_call.1} parent=11 // pred_fallthru
          _
        // Predicated region
        $region49: #{tpu_custom_call.1} parent=11 // pred_check
          %p404 = pneg %p266
        $region50: #{tpu_custom_call.1} parent=11 // pred_check_branch
          %406 = sbr.rel (%p404) target = $region52
        $region51: #{tpu_custom_call.1} parent=11 // pred_region
          _
        $region52: #{tpu_custom_call.1} parent=11 // pred_fallthru
          _
      $region12: #{tpu_custom_call.1} parent=5 // pred_fallthru
        _
      %p407 = scmp.lt.s32.totalorder %s30, 2
      // Predicated region
      $region53: #{tpu_custom_call.1} parent=5 // pred_check
        %p408 = pneg %p407
      $region54: #{tpu_custom_call.1} parent=5 // pred_check_branch
        %410 = sbr.rel (%p408) target = $region56
      $region55: #{tpu_custom_call.1} parent=5 // pred_region
        // Predicated region
        $region57: #{tpu_custom_call.1} parent=55 // pred_check
          %p411 = pneg %p50
        $region58: #{tpu_custom_call.1} parent=55 // pred_check_branch
          %413 = sbr.rel (%p411) target = $region60
        $region59: #{tpu_custom_call.1} parent=55 // pred_region
          %s414 = sand.u32 %s40, 1
          %s415 = scalar_lea.sflag [#allocation3], %s414
          %s416 = sand.u32 %s40, 1
          %s417 = smul.addr %s416, 8
          %s418 = scalar_lea.vmem [#allocation2], %s417
          %420 = vsyncadd %s415, 0
          %s421 = smul.addr %s30, 8
          %s422 = scalar_lea.hbm %s0, %s421
          %s424 = sshll.u32 %s422, 4
          %s425 = int_to_ptr.hbm [resolvable:$true] %s424
          %s426 = sshll.u32 %s418, 4
          %s427 = int_to_ptr.vmem [resolvable:$true] %s426
          %429 = dma.hbm_to_vmem [thread:$0]  %s425, 128, %s427, %s415
        $region60: #{tpu_custom_call.1} parent=55 // pred_fallthru
          _
      $region56: #{tpu_custom_call.1} parent=5 // pred_fallthru
        _
      %p430 = scmp.le.s32.totalorder 1, %s30
      %p431 = scmp.lt.s32.totalorder %s30, 3
      %p432 = pnand %p430, %p431
      %p433 = pneg %p432
      // Predicated region
      $region61: #{tpu_custom_call.1} parent=5 // pred_check
        _
      $region62: #{tpu_custom_call.1} parent=5 // pred_check_branch
        %435 = sbr.rel (%p432) target = $region64
      $region63: #{tpu_custom_call.1} parent=5 // pred_region
        %s436 = ssub.s32 %s30, 1
        %s437 = sand.u32 %s43, 1
        %s438 = scalar_lea.sflag [#allocation3], %s437
        %s439 = sand.u32 %s43, 1
        %s440 = smul.addr %s439, 8
        %s441 = scalar_lea.vmem [#allocation2], %s440
        // Predicated region
        $region65: #{tpu_custom_call.1} parent=63 // pred_check
          %p442 = pneg %p56
        $region66: #{tpu_custom_call.1} parent=63 // pred_check_branch
          %444 = sbr.rel (%p442) target = $region68
        $region67: #{tpu_custom_call.1} parent=63 // pred_region
          %446 = dma.done %s438, 128
        $region68: #{tpu_custom_call.1} parent=63 // pred_fallthru
          _
        // Predicated region
        $region69: #{tpu_custom_call.1} parent=63 // pred_check
          %p447 = pneg %p77
        $region70: #{tpu_custom_call.1} parent=63 // pred_check_branch
          %449 = sbr.rel (%p447) target = $region72
        $region71: #{tpu_custom_call.1} parent=63 // pred_region
          %451 = dma.done [#allocation6], 1024
        $region72: #{tpu_custom_call.1} parent=63 // pred_fallthru
          _
        // Predicated region
        $region73: #{tpu_custom_call.1} parent=63 // pred_check
          %p452 = pneg %p119
        $region74: #{tpu_custom_call.1} parent=63 // pred_check_branch
          %454 = sbr.rel (%p452) target = $region76
        $region75: #{tpu_custom_call.1} parent=63 // pred_region
          %456 = dma.done [#allocation6], 1024
        $region76: #{tpu_custom_call.1} parent=63 // pred_fallthru
          _
        // Predicated region
        $region77: #{tpu_custom_call.1} parent=63 // pred_check
          %p457 = pneg %p161
        $region78: #{tpu_custom_call.1} parent=63 // pred_check_branch
          %459 = sbr.rel (%p457) target = $region80
        $region79: #{tpu_custom_call.1} parent=63 // pred_region
          %461 = dma.done [#allocation9], 1024
        $region80: #{tpu_custom_call.1} parent=63 // pred_fallthru
          _
        // Predicated region
        $region81: #{tpu_custom_call.1} parent=63 // pred_check
          %p462 = pneg %p203
        $region82: #{tpu_custom_call.1} parent=63 // pred_check_branch
          %464 = sbr.rel (%p462) target = $region84
        $region83: #{tpu_custom_call.1} parent=63 // pred_region
          %466 = dma.done [#allocation9], 1024
        $region84: #{tpu_custom_call.1} parent=63 // pred_fallthru
          _
        %s467 = sand.u32 %s43, 1
        %s468 = scalar_lea.sflag [#allocation3], %s467
        %s469 = sand.u32 %s43, 1
        %s470 = smul.addr %s469, 8
        %s471 = scalar_lea.vmem [#allocation2], %s470
        %p472 = pneg %p56
        %p473 = pneg %p53
        %p474 = pneg %p77
        %p475 = pneg %p74
        %p476 = pneg %p98
        %p477 = pneg %p95
        %p478 = pneg %p119
        %p479 = pneg %p116
        %p480 = pneg %p140
        %p481 = pneg %p137
        %p482 = pneg %p161
        %p483 = pneg %p158
        %p484 = pneg %p182
        %p485 = pneg %p179
        %p486 = pneg %p203
        %p487 = pneg %p200
        %p488 = pneg %p224
        %p489 = pneg %p221
        %p490 = pneg %p245
        %p491 = pneg %p242
        %p492 = pneg %p266
        %p493 = pneg %p263
        %p494 = pneg %p292
        %p495 = pneg %p289
        %s496 = sand.u32 %s279, 1
        %s497 = scalar_lea.sflag [#allocation4], %s496
        %s498 = sand.u32 %s279, 1
        %s499 = smul.addr %s498, 8
        %s500 = scalar_lea.vmem [#allocation11], %s499
        %p501 = pneg %p318
        %p502 = pneg %p315
        %s503 = sand.u32 %s305, 1
        %s504 = scalar_lea.sflag [#allocation13], %s503
        %s505 = sand.u32 %s305, 1
        %s506 = smul.addr %s505, 4
        %s507 = scalar_lea.vmem [#allocation12], %s506
        %v509 = vld [vmem:[%s441] sm:$0xff]
        %v510 = vpack.c.bf16 %v509, %v509
        %v511 = vld [vmem:[#allocation5] sm:$0xf]
        %v512 = vld [vmem:[#allocation5 + $0x4] sm:$0xf]
        %v513 = vld [vmem:[#allocation5 + $0x8] sm:$0xf]
        %v514 = vld [vmem:[#allocation5 + $0xc] sm:$0xf]
        %v515 = vld [vmem:[#allocation5 + $0x10] sm:$0xf]
        %v516 = vld [vmem:[#allocation5 + $0x14] sm:$0xf]
        %v517 = vld [vmem:[#allocation5 + $0x18] sm:$0xf]
        %v518 = vld [vmem:[#allocation5 + $0x1c] sm:$0xf]
        %v519 = vld [vmem:[#allocation5 + $0x20] sm:$0xf]
        %v520 = vld [vmem:[#allocation5 + $0x24] sm:$0xf]
        %v521 = vld [vmem:[#allocation5 + $0x28] sm:$0xf]
        %v522 = vld [vmem:[#allocation5 + $0x2c] sm:$0xf]
        %v523 = vld [vmem:[#allocation5 + $0x30] sm:$0xf]
        %v524 = vld [vmem:[#allocation5 + $0x34] sm:$0xf]
        %v525 = vld [vmem:[#allocation5 + $0x38] sm:$0xf]
        %v526 = vld [vmem:[#allocation5 + $0x3c] sm:$0xf]
        %v527 = vld [vmem:[%s2] sm:$0x1]
        %v529 = vperm.slane %v527, 0
        %v547 = vunpack.c.l.b16 %v511
        %v548 = vunpack.c.l.b16 %v512
        %v549 = vunpack.c.l.b16 %v513
        %v550 = vunpack.c.l.b16 %v514
        %v551 = vunpack.c.l.b16 %v515
        %v552 = vunpack.c.l.b16 %v516
        %v553 = vunpack.c.l.b16 %v517
        %v554 = vunpack.c.l.b16 %v518
        %v555 = vunpack.c.l.b16 %v519
        %v556 = vunpack.c.l.b16 %v520
        %v557 = vunpack.c.l.b16 %v521
        %v558 = vunpack.c.l.b16 %v522
        %v559 = vunpack.c.l.b16 %v523
        %v560 = vunpack.c.l.b16 %v524
        %v561 = vunpack.c.l.b16 %v525
        %v562 = vunpack.c.l.b16 %v526
        %v563 = vpack.c.b16 %v548, %v547
        %v564 = vpack.c.b16 %v550, %v549
        %v565 = vpack.c.b16 %v552, %v551
        %v566 = vpack.c.b16 %v554, %v553
        %v567 = vpack.c.b16 %v556, %v555
        %v568 = vpack.c.b16 %v558, %v557
        %v569 = vpack.c.b16 %v560, %v559
        %v570 = vpack.c.b16 %v562, %v561
        %579 = vmatpush.bf16.msra.mxu0 %v570
        %580 = vmatpush.bf16.msra.mxu0 %v569
        %581 = vmatpush.bf16.msra.mxu0 %v568
        %582 = vmatpush.bf16.msra.mxu0 %v567
        %583 = vmatpush.bf16.msra.mxu0 %v566
        %584 = vmatpush.bf16.msra.mxu0 %v565
        %585 = vmatpush.bf16.msra.mxu0 %v564
        %586 = vmatpush.bf16.msra.mxu0 %v563
        %587 = vmatmul.bf16.gmra.mxu0 %v510
        %v588 = vpop.f32.mrf.mxu0
        %v589 = vadd.f32 %v529, %v588
        %v590 = vpop.f32.mrf.mxu0
        %591 = vdwg.mxu0
        %v592 = vld [vmem:[#allocation7] sm:$0xf]
        %v593 = vld [vmem:[#allocation7 + $0x4] sm:$0xf]
        %v594 = vld [vmem:[#allocation7 + $0x8] sm:$0xf]
        %v595 = vld [vmem:[#allocation7 + $0xc] sm:$0xf]
        %v596 = vld [vmem:[#allocation7 + $0x10] sm:$0xf]
        %v597 = vld [vmem:[#allocation7 + $0x14] sm:$0xf]
        %v598 = vld [vmem:[#allocation7 + $0x18] sm:$0xf]
        %v599 = vld [vmem:[#allocation7 + $0x1c] sm:$0xf]
        %v600 = vld [vmem:[#allocation7 + $0x20] sm:$0xf]
        %v601 = vld [vmem:[#allocation7 + $0x24] sm:$0xf]
        %v602 = vld [vmem:[#allocation7 + $0x28] sm:$0xf]
        %v603 = vld [vmem:[#allocation7 + $0x2c] sm:$0xf]
        %v604 = vld [vmem:[#allocation7 + $0x30] sm:$0xf]
        %v605 = vld [vmem:[#allocation7 + $0x34] sm:$0xf]
        %v606 = vld [vmem:[#allocation7 + $0x38] sm:$0xf]
        %v607 = vld [vmem:[#allocation7 + $0x3c] sm:$0xf]
        %v608 = vld [vmem:[%s4] sm:$0x1]
        %v610 = vperm.slane %v608, 0
        %v628 = vunpack.c.l.b16 %v592
        %v629 = vunpack.c.l.b16 %v593
        %v630 = vunpack.c.l.b16 %v594
        %v631 = vunpack.c.l.b16 %v595
        %v632 = vunpack.c.l.b16 %v596
        %v633 = vunpack.c.l.b16 %v597
        %v634 = vunpack.c.l.b16 %v598
        %v635 = vunpack.c.l.b16 %v599
        %v636 = vunpack.c.l.b16 %v600
        %v637 = vunpack.c.l.b16 %v601
        %v638 = vunpack.c.l.b16 %v602
        %v639 = vunpack.c.l.b16 %v603
        %v640 = vunpack.c.l.b16 %v604
        %v641 = vunpack.c.l.b16 %v605
        %v642 = vunpack.c.l.b16 %v606
        %v643 = vunpack.c.l.b16 %v607
        %v644 = vpack.c.b16 %v629, %v628
        %v645 = vpack.c.b16 %v631, %v630
        %v646 = vpack.c.b16 %v633, %v632
        %v647 = vpack.c.b16 %v635, %v634
        %v648 = vpack.c.b16 %v637, %v636
        %v649 = vpack.c.b16 %v639, %v638
        %v650 = vpack.c.b16 %v641, %v640
        %v651 = vpack.c.b16 %v643, %v642
        %660 = vmatpush.bf16.msra.mxu0 %v651
        %661 = vmatpush.bf16.msra.mxu0 %v650
        %662 = vmatpush.bf16.msra.mxu0 %v649
        %663 = vmatpush.bf16.msra.mxu0 %v648
        %664 = vmatpush.bf16.msra.mxu0 %v647
        %665 = vmatpush.bf16.msra.mxu0 %v646
        %666 = vmatpush.bf16.msra.mxu0 %v645
        %667 = vmatpush.bf16.msra.mxu0 %v644
        %668 = vmatmul.bf16.gmra.mxu0 %v510
        %v669 = vpop.f32.mrf.mxu0
        %v670 = vadd.f32 %v610, %v669
        %v671 = vpop.f32.mrf.mxu0
        %672 = vdwg.mxu0
        %v673 = vld [vmem:[#allocation8] sm:$0xf]
        %v674 = vld [vmem:[#allocation8 + $0x4] sm:$0xf]
        %v675 = vld [vmem:[#allocation8 + $0x8] sm:$0xf]
        %v676 = vld [vmem:[#allocation8 + $0xc] sm:$0xf]
        %v677 = vld [vmem:[#allocation8 + $0x10] sm:$0xf]
        %v678 = vld [vmem:[#allocation8 + $0x14] sm:$0xf]
        %v679 = vld [vmem:[#allocation8 + $0x18] sm:$0xf]
        %v680 = vld [vmem:[#allocation8 + $0x1c] sm:$0xf]
        %v681 = vld [vmem:[#allocation8 + $0x20] sm:$0xf]
        %v682 = vld [vmem:[#allocation8 + $0x24] sm:$0xf]
        %v683 = vld [vmem:[#allocation8 + $0x28] sm:$0xf]
        %v684 = vld [vmem:[#allocation8 + $0x2c] sm:$0xf]
        %v685 = vld [vmem:[#allocation8 + $0x30] sm:$0xf]
        %v686 = vld [vmem:[#allocation8 + $0x34] sm:$0xf]
        %v687 = vld [vmem:[#allocation8 + $0x38] sm:$0xf]
        %v688 = vld [vmem:[#allocation8 + $0x3c] sm:$0xf]
        %v689 = vld [vmem:[%s6] sm:$0x1]
        %v691 = vperm.slane %v689, 0
        %v709 = vunpack.c.l.b16 %v673
        %v710 = vunpack.c.l.b16 %v674
        %v711 = vunpack.c.l.b16 %v675
        %v712 = vunpack.c.l.b16 %v676
        %v713 = vunpack.c.l.b16 %v677
        %v714 = vunpack.c.l.b16 %v678
        %v715 = vunpack.c.l.b16 %v679
        %v716 = vunpack.c.l.b16 %v680
        %v717 = vunpack.c.l.b16 %v681
        %v718 = vunpack.c.l.b16 %v682
        %v719 = vunpack.c.l.b16 %v683
        %v720 = vunpack.c.l.b16 %v684
        %v721 = vunpack.c.l.b16 %v685
        %v722 = vunpack.c.l.b16 %v686
        %v723 = vunpack.c.l.b16 %v687
        %v724 = vunpack.c.l.b16 %v688
        %v725 = vpack.c.b16 %v710, %v709
        %v726 = vpack.c.b16 %v712, %v711
        %v727 = vpack.c.b16 %v714, %v713
        %v728 = vpack.c.b16 %v716, %v715
        %v729 = vpack.c.b16 %v718, %v717
        %v730 = vpack.c.b16 %v720, %v719
        %v731 = vpack.c.b16 %v722, %v721
        %v732 = vpack.c.b16 %v724, %v723
        %741 = vmatpush.bf16.msra.mxu0 %v732
        %742 = vmatpush.bf16.msra.mxu0 %v731
        %743 = vmatpush.bf16.msra.mxu0 %v730
        %744 = vmatpush.bf16.msra.mxu0 %v729
        %745 = vmatpush.bf16.msra.mxu0 %v728
        %746 = vmatpush.bf16.msra.mxu0 %v727
        %747 = vmatpush.bf16.msra.mxu0 %v726
        %748 = vmatpush.bf16.msra.mxu0 %v725
        %749 = vmatmul.bf16.gmra.mxu0 %v510
        %v750 = vpop.f32.mrf.mxu0
        %v751 = vadd.f32 %v691, %v750
        %v752 = vpop.f32.mrf.mxu0
        %753 = vdwg.mxu0
        %v754 = vmul.f32 %v589, 0.25
        %v755 = vpack.c.bf16 %v754, %v754
        %v756 = vpack.c.bf16 %v670, %v670
        %v757 = vpack.c.bf16 %v751, %v751
        %vm758 = vcmask 130048
        %v760 = vsel %vm758, %v755, 0
        %v763 = vsel %vm758, %v756, 0
        %765 = vmatpush.bf16.xpose.msra.mxu0 0
        %766 = vmatpush.bf16.xpose.msra.mxu0 0
        %767 = vmatpush.bf16.xpose.msra.mxu0 0
        %768 = vmatpush.bf16.xpose.msra.mxu0 0
        %769 = vmatpush.bf16.xpose.msra.mxu0 0
        %770 = vmatpush.bf16.xpose.msra.mxu0 0
        %771 = vmatpush.bf16.xpose.msra.mxu0 0
        %772 = vmatpush.bf16.xpose.msra.mxu0 %v763
        %773 = vmatmul.bf16.gmra.mxu0 %v760
        %v774 = vpop.f32.mrf.mxu0
        %v775 = vadd.f32 0.0, %v774
        %v776 = vpop.f32.mrf.mxu0
        %777 = vdwg.mxu0
        %vm778 = vcmask 64512
        %v779 = vsel %vm778, %v775, -inf
        %780 = vmax.xlane.f32.xlu0 %v779
        %v781 = vpop.xlane.xlu0 %780
        %v782 = vsub.f32 %v775, %v781
        %v783 = vmul.f32 %v782, 1.442695
        %v784 = vpow.pop %v783
        %v785 = vsel %vm778, %v784, 0.0
        %786 = vadd.xlane.f32.xlu0 %v785
        %v787 = vpop.xlane.xlu0 %786
        %v788 = vrcp.pop %v787
        %v789 = vmul.f32 %v787, %v788
        %v790 = vsub.f32 1.0, %v789
        %v791 = vmul.f32 %v788, %v790
        %v792 = vadd.f32 %v788, %v791
        %vm793 = vweird.f32 %v787
        %vm794 = vweird.f32 %v788
        %vm795 = vmor %vm793, %vm794
        %v796 = vsel %vm795, %v788, %v792
        %v797 = vand.u32 2147483647, %v787
        %vm798 = vcmp.eq.f32.partialorder %v797, 8.507059e+37
        %v799 = vand.u32 %v787, 2147483648
        %v800 = vor.u32 1.1754944e-38, %v799
        %v801 = vsel %vm798, %v800, %v796
        %v802 = vmul.f32 %v784, %v801
        %v803 = vpack.c.bf16 %v802, %v802
        %v805 = vsel %vm778, %v803, 0
        %vm807 = vcmask 1043456
        %v809 = vsel %vm807, %v757, 0
        %811 = vmatpush.bf16.msra.mxu0 0
        %812 = vmatpush.bf16.msra.mxu0 0
        %813 = vmatpush.bf16.msra.mxu0 0
        %814 = vmatpush.bf16.msra.mxu0 0
        %815 = vmatpush.bf16.msra.mxu0 0
        %816 = vmatpush.bf16.msra.mxu0 0
        %817 = vmatpush.bf16.msra.mxu0 0
        %818 = vmatpush.bf16.msra.mxu0 %v809
        %819 = vmatmul.bf16.gmra.mxu0 %v805
        %v820 = vpop.f32.mrf.mxu0
        %v821 = vadd.f32 0.0, %v820
        %v822 = vpop.f32.mrf.mxu0
        %823 = vdwg.mxu0
        %825 = vrot.lane.b32.xlu0 %v755, 112
        %v826 = vpop.permute.xlu0 %825
        %828 = vrot.lane.b32.xlu0 %v756, 112
        %v829 = vpop.permute.xlu0 %828
        %v831 = vsel %vm758, %v826, 0
        %v834 = vsel %vm758, %v829, 0
        %836 = vmatpush.bf16.xpose.msra.mxu0 0
        %837 = vmatpush.bf16.xpose.msra.mxu0 0
        %838 = vmatpush.bf16.xpose.msra.mxu0 0
        %839 = vmatpush.bf16.xpose.msra.mxu0 0
        %840 = vmatpush.bf16.xpose.msra.mxu0 0
        %841 = vmatpush.bf16.xpose.msra.mxu0 0
        %842 = vmatpush.bf16.xpose.msra.mxu0 0
        %843 = vmatpush.bf16.xpose.msra.mxu0 %v834
        %844 = vmatmul.bf16.gmra.mxu0 %v831
        %v845 = vpop.f32.mrf.mxu0
        %v846 = vadd.f32 0.0, %v845
        %v847 = vpop.f32.mrf.mxu0
        %848 = vdwg.mxu0
        %v849 = vsel %vm778, %v846, -inf
        %850 = vmax.xlane.f32.xlu0 %v849
        %v851 = vpop.xlane.xlu0 %850
        %v852 = vsub.f32 %v846, %v851
        %v853 = vmul.f32 %v852, 1.442695
        %v854 = vpow.pop %v853
        %v855 = vsel %vm778, %v854, 0.0
        %856 = vadd.xlane.f32.xlu0 %v855
        %v857 = vpop.xlane.xlu0 %856
        %v858 = vrcp.pop %v857
        %v859 = vmul.f32 %v857, %v858
        %v860 = vsub.f32 1.0, %v859
        %v861 = vmul.f32 %v858, %v860
        %v862 = vadd.f32 %v858, %v861
        %vm863 = vweird.f32 %v857
        %vm864 = vweird.f32 %v858
        %vm865 = vmor %vm863, %vm864
        %v866 = vsel %vm865, %v858, %v862
        %v867 = vand.u32 2147483647, %v857
        %vm868 = vcmp.eq.f32.partialorder %v867, 8.507059e+37
        %v869 = vand.u32 %v857, 2147483648
        %v870 = vor.u32 1.1754944e-38, %v869
        %v871 = vsel %vm868, %v870, %v866
        %v872 = vmul.f32 %v854, %v871
        %v873 = vpack.c.bf16 %v872, %v872
        %875 = vrot.lane.b32.xlu0 %v757, 112
        %v876 = vpop.permute.xlu0 %875
        %v878 = vsel %vm778, %v873, 0
        %v881 = vsel %vm807, %v876, 0
        %883 = vmatpush.bf16.msra.mxu0 0
        %884 = vmatpush.bf16.msra.mxu0 0
        %885 = vmatpush.bf16.msra.mxu0 0
        %886 = vmatpush.bf16.msra.mxu0 0
        %887 = vmatpush.bf16.msra.mxu0 0
        %888 = vmatpush.bf16.msra.mxu0 0
        %889 = vmatpush.bf16.msra.mxu0 0
        %890 = vmatpush.bf16.msra.mxu0 %v881
        %891 = vmatmul.bf16.gmra.mxu0 %v878
        %v892 = vpop.f32.mrf.mxu0
        %v893 = vadd.f32 0.0, %v892
        %v894 = vpop.f32.mrf.mxu0
        %895 = vdwg.mxu0
        %896 = vrot.lane.b32.xlu0 %v755, 96
        %v897 = vpop.permute.xlu0 %896
        %898 = vrot.lane.b32.xlu0 %v756, 96
        %v899 = vpop.permute.xlu0 %898
        %v901 = vsel %vm758, %v897, 0
        %v904 = vsel %vm758, %v899, 0
        %906 = vmatpush.bf16.xpose.msra.mxu0 0
        %907 = vmatpush.bf16.xpose.msra.mxu0 0
        %908 = vmatpush.bf16.xpose.msra.mxu0 0
        %909 = vmatpush.bf16.xpose.msra.mxu0 0
        %910 = vmatpush.bf16.xpose.msra.mxu0 0
        %911 = vmatpush.bf16.xpose.msra.mxu0 0
        %912 = vmatpush.bf16.xpose.msra.mxu0 0
        %913 = vmatpush.bf16.xpose.msra.mxu0 %v904
        %914 = vmatmul.bf16.gmra.mxu0 %v901
        %v915 = vpop.f32.mrf.mxu0
        %v916 = vadd.f32 0.0, %v915
        %v917 = vpop.f32.mrf.mxu0
        %918 = vdwg.mxu0
        %v919 = vsel %vm778, %v916, -inf
        %920 = vmax.xlane.f32.xlu0 %v919
        %v921 = vpop.xlane.xlu0 %920
        %v922 = vsub.f32 %v916, %v921
        %v923 = vmul.f32 %v922, 1.442695
        %v924 = vpow.pop %v923
        %v925 = vsel %vm778, %v924, 0.0
        %926 = vadd.xlane.f32.xlu0 %v925
        %v927 = vpop.xlane.xlu0 %926
        %v928 = vrcp.pop %v927
        %v929 = vmul.f32 %v927, %v928
        %v930 = vsub.f32 1.0, %v929
        %v931 = vmul.f32 %v928, %v930
        %v932 = vadd.f32 %v928, %v931
        %vm933 = vweird.f32 %v927
        %vm934 = vweird.f32 %v928
        %vm935 = vmor %vm933, %vm934
        %v936 = vsel %vm935, %v928, %v932
        %v937 = vand.u32 2147483647, %v927
        %vm938 = vcmp.eq.f32.partialorder %v937, 8.507059e+37
        %v939 = vand.u32 %v927, 2147483648
        %v940 = vor.u32 1.1754944e-38, %v939
        %v941 = vsel %vm938, %v940, %v936
        %v942 = vmul.f32 %v924, %v941
        %v943 = vpack.c.bf16 %v942, %v942
        %944 = vrot.lane.b32.xlu0 %v757, 96
        %v945 = vpop.permute.xlu0 %944
        %v947 = vsel %vm778, %v943, 0
        %v950 = vsel %vm807, %v945, 0
        %952 = vmatpush.bf16.msra.mxu0 0
        %953 = vmatpush.bf16.msra.mxu0 0
        %954 = vmatpush.bf16.msra.mxu0 0
        %955 = vmatpush.bf16.msra.mxu0 0
        %956 = vmatpush.bf16.msra.mxu0 0
        %957 = vmatpush.bf16.msra.mxu0 0
        %958 = vmatpush.bf16.msra.mxu0 0
        %959 = vmatpush.bf16.msra.mxu0 %v950
        %960 = vmatmul.bf16.gmra.mxu0 %v947
        %v961 = vpop.f32.mrf.mxu0
        %v962 = vadd.f32 0.0, %v961
        %v963 = vpop.f32.mrf.mxu0
        %964 = vdwg.mxu0
        %965 = vrot.lane.b32.xlu0 %v755, 80
        %v966 = vpop.permute.xlu0 %965
        %967 = vrot.lane.b32.xlu0 %v756, 80
        %v968 = vpop.permute.xlu0 %967
        %v970 = vsel %vm758, %v966, 0
        %v973 = vsel %vm758, %v968, 0
        %975 = vmatpush.bf16.xpose.msra.mxu0 0
        %976 = vmatpush.bf16.xpose.msra.mxu0 0
        %977 = vmatpush.bf16.xpose.msra.mxu0 0
        %978 = vmatpush.bf16.xpose.msra.mxu0 0
        %979 = vmatpush.bf16.xpose.msra.mxu0 0
        %980 = vmatpush.bf16.xpose.msra.mxu0 0
        %981 = vmatpush.bf16.xpose.msra.mxu0 0
        %982 = vmatpush.bf16.xpose.msra.mxu0 %v973
        %983 = vmatmul.bf16.gmra.mxu0 %v970
        %v984 = vpop.f32.mrf.mxu0
        %v985 = vadd.f32 0.0, %v984
        %v986 = vpop.f32.mrf.mxu0
        %987 = vdwg.mxu0
        %v988 = vsel %vm778, %v985, -inf
        %989 = vmax.xlane.f32.xlu0 %v988
        %v990 = vpop.xlane.xlu0 %989
        %v991 = vsub.f32 %v985, %v990
        %v992 = vmul.f32 %v991, 1.442695
        %v993 = vpow.pop %v992
        %v994 = vsel %vm778, %v993, 0.0
        %995 = vadd.xlane.f32.xlu0 %v994
        %v996 = vpop.xlane.xlu0 %995
        %v997 = vrcp.pop %v996
        %v998 = vmul.f32 %v996, %v997
        %v999 = vsub.f32 1.0, %v998
        %v1000 = vmul.f32 %v997, %v999
        %v1001 = vadd.f32 %v997, %v1000
        %vm1002 = vweird.f32 %v996
        %vm1003 = vweird.f32 %v997
        %vm1004 = vmor %vm1002, %vm1003
        %v1005 = vsel %vm1004, %v997, %v1001
        %v1006 = vand.u32 2147483647, %v996
        %vm1007 = vcmp.eq.f32.partialorder %v1006, 8.507059e+37
        %v1008 = vand.u32 %v996, 2147483648
        %v1009 = vor.u32 1.1754944e-38, %v1008
        %v1010 = vsel %vm1007, %v1009, %v1005
        %v1011 = vmul.f32 %v993, %v1010
        %v1012 = vpack.c.bf16 %v1011, %v1011
        %1013 = vrot.lane.b32.xlu0 %v757, 80
        %v1014 = vpop.permute.xlu0 %1013
        %v1016 = vsel %vm778, %v1012, 0
        %v1019 = vsel %vm807, %v1014, 0
        %1021 = vmatpush.bf16.msra.mxu0 0
        %1022 = vmatpush.bf16.msra.mxu0 0
        %1023 = vmatpush.bf16.msra.mxu0 0
        %1024 = vmatpush.bf16.msra.mxu0 0
        %1025 = vmatpush.bf16.msra.mxu0 0
        %1026 = vmatpush.bf16.msra.mxu0 0
        %1027 = vmatpush.bf16.msra.mxu0 0
        %1028 = vmatpush.bf16.msra.mxu0 %v1019
        %1029 = vmatmul.bf16.gmra.mxu0 %v1016
        %v1030 = vpop.f32.mrf.mxu0
        %v1031 = vadd.f32 0.0, %v1030
        %v1032 = vpop.f32.mrf.mxu0
        %1033 = vdwg.mxu0
        %1034 = vrot.lane.b32.xlu0 %v755, 64
        %v1035 = vpop.permute.xlu0 %1034
        %1036 = vrot.lane.b32.xlu0 %v756, 64
        %v1037 = vpop.permute.xlu0 %1036
        %v1039 = vsel %vm758, %v1035, 0
        %v1042 = vsel %vm758, %v1037, 0
        %1044 = vmatpush.bf16.xpose.msra.mxu0 0
        %1045 = vmatpush.bf16.xpose.msra.mxu0 0
        %1046 = vmatpush.bf16.xpose.msra.mxu0 0
        %1047 = vmatpush.bf16.xpose.msra.mxu0 0
        %1048 = vmatpush.bf16.xpose.msra.mxu0 0
        %1049 = vmatpush.bf16.xpose.msra.mxu0 0
        %1050 = vmatpush.bf16.xpose.msra.mxu0 0
        %1051 = vmatpush.bf16.xpose.msra.mxu0 %v1042
        %1052 = vmatmul.bf16.gmra.mxu0 %v1039
        %v1053 = vpop.f32.mrf.mxu0
        %v1054 = vadd.f32 0.0, %v1053
        %v1055 = vpop.f32.mrf.mxu0
        %1056 = vdwg.mxu0
        %v1057 = vsel %vm778, %v1054, -inf
        %1058 = vmax.xlane.f32.xlu0 %v1057
        %v1059 = vpop.xlane.xlu0 %1058
        %v1060 = vsub.f32 %v1054, %v1059
        %v1061 = vmul.f32 %v1060, 1.442695
        %v1062 = vpow.pop %v1061
        %v1063 = vsel %vm778, %v1062, 0.0
        %1064 = vadd.xlane.f32.xlu0 %v1063
        %v1065 = vpop.xlane.xlu0 %1064
        %v1066 = vrcp.pop %v1065
        %v1067 = vmul.f32 %v1065, %v1066
        %v1068 = vsub.f32 1.0, %v1067
        %v1069 = vmul.f32 %v1066, %v1068
        %v1070 = vadd.f32 %v1066, %v1069
        %vm1071 = vweird.f32 %v1065
        %vm1072 = vweird.f32 %v1066
        %vm1073 = vmor %vm1071, %vm1072
        %v1074 = vsel %vm1073, %v1066, %v1070
        %v1075 = vand.u32 2147483647, %v1065
        %vm1076 = vcmp.eq.f32.partialorder %v1075, 8.507059e+37
        %v1077 = vand.u32 %v1065, 2147483648
        %v1078 = vor.u32 1.1754944e-38, %v1077
        %v1079 = vsel %vm1076, %v1078, %v1074
        %v1080 = vmul.f32 %v1062, %v1079
        %v1081 = vpack.c.bf16 %v1080, %v1080
        %1082 = vrot.lane.b32.xlu0 %v757, 64
        %v1083 = vpop.permute.xlu0 %1082
        %v1085 = vsel %vm778, %v1081, 0
        %v1088 = vsel %vm807, %v1083, 0
        %1090 = vmatpush.bf16.msra.mxu0 0
        %1091 = vmatpush.bf16.msra.mxu0 0
        %1092 = vmatpush.bf16.msra.mxu0 0
        %1093 = vmatpush.bf16.msra.mxu0 0
        %1094 = vmatpush.bf16.msra.mxu0 0
        %1095 = vmatpush.bf16.msra.mxu0 0
        %1096 = vmatpush.bf16.msra.mxu0 0
        %1097 = vmatpush.bf16.msra.mxu0 %v1088
        %1098 = vmatmul.bf16.gmra.mxu0 %v1085
        %v1099 = vpop.f32.mrf.mxu0
        %v1100 = vadd.f32 0.0, %v1099
        %v1101 = vpop.f32.mrf.mxu0
        %1102 = vdwg.mxu0
        %1103 = vrot.lane.b32.xlu0 %v755, 48
        %v1104 = vpop.permute.xlu0 %1103
        %1105 = vrot.lane.b32.xlu0 %v756, 48
        %v1106 = vpop.permute.xlu0 %1105
        %v1108 = vsel %vm758, %v1104, 0
        %v1111 = vsel %vm758, %v1106, 0
        %1113 = vmatpush.bf16.xpose.msra.mxu0 0
        %1114 = vmatpush.bf16.xpose.msra.mxu0 0
        %1115 = vmatpush.bf16.xpose.msra.mxu0 0
        %1116 = vmatpush.bf16.xpose.msra.mxu0 0
        %1117 = vmatpush.bf16.xpose.msra.mxu0 0
        %1118 = vmatpush.bf16.xpose.msra.mxu0 0
        %1119 = vmatpush.bf16.xpose.msra.mxu0 0
        %1120 = vmatpush.bf16.xpose.msra.mxu0 %v1111
        %1121 = vmatmul.bf16.gmra.mxu0 %v1108
        %v1122 = vpop.f32.mrf.mxu0
        %v1123 = vadd.f32 0.0, %v1122
        %v1124 = vpop.f32.mrf.mxu0
        %1125 = vdwg.mxu0
        %v1126 = vsel %vm778, %v1123, -inf
        %1127 = vmax.xlane.f32.xlu0 %v1126
        %v1128 = vpop.xlane.xlu0 %1127
        %v1129 = vsub.f32 %v1123, %v1128
        %v1130 = vmul.f32 %v1129, 1.442695
        %v1131 = vpow.pop %v1130
        %v1132 = vsel %vm778, %v1131, 0.0
        %1133 = vadd.xlane.f32.xlu0 %v1132
        %v1134 = vpop.xlane.xlu0 %1133
        %v1135 = vrcp.pop %v1134
        %v1136 = vmul.f32 %v1134, %v1135
        %v1137 = vsub.f32 1.0, %v1136
        %v1138 = vmul.f32 %v1135, %v1137
        %v1139 = vadd.f32 %v1135, %v1138
        %vm1140 = vweird.f32 %v1134
        %vm1141 = vweird.f32 %v1135
        %vm1142 = vmor %vm1140, %vm1141
        %v1143 = vsel %vm1142, %v1135, %v1139
        %v1144 = vand.u32 2147483647, %v1134
        %vm1145 = vcmp.eq.f32.partialorder %v1144, 8.507059e+37
        %v1146 = vand.u32 %v1134, 2147483648
        %v1147 = vor.u32 1.1754944e-38, %v1146
        %v1148 = vsel %vm1145, %v1147, %v1143
        %v1149 = vmul.f32 %v1131, %v1148
        %v1150 = vpack.c.bf16 %v1149, %v1149
        %1151 = vrot.lane.b32.xlu0 %v757, 48
        %v1152 = vpop.permute.xlu0 %1151
        %v1154 = vsel %vm778, %v1150, 0
        %v1157 = vsel %vm807, %v1152, 0
        %1159 = vmatpush.bf16.msra.mxu0 0
        %1160 = vmatpush.bf16.msra.mxu0 0
        %1161 = vmatpush.bf16.msra.mxu0 0
        %1162 = vmatpush.bf16.msra.mxu0 0
        %1163 = vmatpush.bf16.msra.mxu0 0
        %1164 = vmatpush.bf16.msra.mxu0 0
        %1165 = vmatpush.bf16.msra.mxu0 0
        %1166 = vmatpush.bf16.msra.mxu0 %v1157
        %1167 = vmatmul.bf16.gmra.mxu0 %v1154
        %v1168 = vpop.f32.mrf.mxu0
        %v1169 = vadd.f32 0.0, %v1168
        %v1170 = vpop.f32.mrf.mxu0
        %1171 = vdwg.mxu0
        %1172 = vrot.lane.b32.xlu0 %v755, 32
        %v1173 = vpop.permute.xlu0 %1172
        %1174 = vrot.lane.b32.xlu0 %v756, 32
        %v1175 = vpop.permute.xlu0 %1174
        %v1177 = vsel %vm758, %v1173, 0
        %v1180 = vsel %vm758, %v1175, 0
        %1182 = vmatpush.bf16.xpose.msra.mxu0 0
        %1183 = vmatpush.bf16.xpose.msra.mxu0 0
        %1184 = vmatpush.bf16.xpose.msra.mxu0 0
        %1185 = vmatpush.bf16.xpose.msra.mxu0 0
        %1186 = vmatpush.bf16.xpose.msra.mxu0 0
        %1187 = vmatpush.bf16.xpose.msra.mxu0 0
        %1188 = vmatpush.bf16.xpose.msra.mxu0 0
        %1189 = vmatpush.bf16.xpose.msra.mxu0 %v1180
        %1190 = vmatmul.bf16.gmra.mxu0 %v1177
        %v1191 = vpop.f32.mrf.mxu0
        %v1192 = vadd.f32 0.0, %v1191
        %v1193 = vpop.f32.mrf.mxu0
        %1194 = vdwg.mxu0
        %v1195 = vsel %vm778, %v1192, -inf
        %1196 = vmax.xlane.f32.xlu0 %v1195
        %v1197 = vpop.xlane.xlu0 %1196
        %v1198 = vsub.f32 %v1192, %v1197
        %v1199 = vmul.f32 %v1198, 1.442695
        %v1200 = vpow.pop %v1199
        %v1201 = vsel %vm778, %v1200, 0.0
        %1202 = vadd.xlane.f32.xlu0 %v1201
        %v1203 = vpop.xlane.xlu0 %1202
        %v1204 = vrcp.pop %v1203
        %v1205 = vmul.f32 %v1203, %v1204
        %v1206 = vsub.f32 1.0, %v1205
        %v1207 = vmul.f32 %v1204, %v1206
        %v1208 = vadd.f32 %v1204, %v1207
        %vm1209 = vweird.f32 %v1203
        %vm1210 = vweird.f32 %v1204
        %vm1211 = vmor %vm1209, %vm1210
        %v1212 = vsel %vm1211, %v1204, %v1208
        %v1213 = vand.u32 2147483647, %v1203
        %vm1214 = vcmp.eq.f32.partialorder %v1213, 8.507059e+37
        %v1215 = vand.u32 %v1203, 2147483648
        %v1216 = vor.u32 1.1754944e-38, %v1215
        %v1217 = vsel %vm1214, %v1216, %v1212
        %v1218 = vmul.f32 %v1200, %v1217
        %v1219 = vpack.c.bf16 %v1218, %v1218
        %1220 = vrot.lane.b32.xlu0 %v757, 32
        %v1221 = vpop.permute.xlu0 %1220
        %v1223 = vsel %vm778, %v1219, 0
        %v1226 = vsel %vm807, %v1221, 0
        %1228 = vmatpush.bf16.msra.mxu0 0
        %1229 = vmatpush.bf16.msra.mxu0 0
        %1230 = vmatpush.bf16.msra.mxu0 0
        %1231 = vmatpush.bf16.msra.mxu0 0
        %1232 = vmatpush.bf16.msra.mxu0 0
        %1233 = vmatpush.bf16.msra.mxu0 0
        %1234 = vmatpush.bf16.msra.mxu0 0
        %1235 = vmatpush.bf16.msra.mxu0 %v1226
        %1236 = vmatmul.bf16.gmra.mxu0 %v1223
        %v1237 = vpop.f32.mrf.mxu0
        %v1238 = vadd.f32 0.0, %v1237
        %v1239 = vpop.f32.mrf.mxu0
        %1240 = vdwg.mxu0
        %1241 = vrot.lane.b32.xlu0 %v755, 16
        %v1242 = vpop.permute.xlu0 %1241
        %1243 = vrot.lane.b32.xlu0 %v756, 16
        %v1244 = vpop.permute.xlu0 %1243
        %v1246 = vsel %vm758, %v1242, 0
        %v1249 = vsel %vm758, %v1244, 0
        %1251 = vmatpush.bf16.xpose.msra.mxu0 0
        %1252 = vmatpush.bf16.xpose.msra.mxu0 0
        %1253 = vmatpush.bf16.xpose.msra.mxu0 0
        %1254 = vmatpush.bf16.xpose.msra.mxu0 0
        %1255 = vmatpush.bf16.xpose.msra.mxu0 0
        %1256 = vmatpush.bf16.xpose.msra.mxu0 0
        %1257 = vmatpush.bf16.xpose.msra.mxu0 0
        %1258 = vmatpush.bf16.xpose.msra.mxu0 %v1249
        %1259 = vmatmul.bf16.gmra.mxu0 %v1246
        %v1260 = vpop.f32.mrf.mxu0
        %v1261 = vadd.f32 0.0, %v1260
        %v1262 = vpop.f32.mrf.mxu0
        %1263 = vdwg.mxu0
        %v1264 = vsel %vm778, %v1261, -inf
        %1265 = vmax.xlane.f32.xlu0 %v1264
        %v1266 = vpop.xlane.xlu0 %1265
        %v1267 = vsub.f32 %v1261, %v1266
        %v1268 = vmul.f32 %v1267, 1.442695
        %v1269 = vpow.pop %v1268
        %v1270 = vsel %vm778, %v1269, 0.0
        %1271 = vadd.xlane.f32.xlu0 %v1270
        %v1272 = vpop.xlane.xlu0 %1271
        %v1273 = vrcp.pop %v1272
        %v1274 = vmul.f32 %v1272, %v1273
        %v1275 = vsub.f32 1.0, %v1274
        %v1276 = vmul.f32 %v1273, %v1275
        %v1277 = vadd.f32 %v1273, %v1276
        %vm1278 = vweird.f32 %v1272
        %vm1279 = vweird.f32 %v1273
        %vm1280 = vmor %vm1278, %vm1279
        %v1281 = vsel %vm1280, %v1273, %v1277
        %v1282 = vand.u32 2147483647, %v1272
        %vm1283 = vcmp.eq.f32.partialorder %v1282, 8.507059e+37
        %v1284 = vand.u32 %v1272, 2147483648
        %v1285 = vor.u32 1.1754944e-38, %v1284
        %v1286 = vsel %vm1283, %v1285, %v1281
        %v1287 = vmul.f32 %v1269, %v1286
        %v1288 = vpack.c.bf16 %v1287, %v1287
        %1289 = vrot.lane.b32.xlu0 %v757, 16
        %v1290 = vpop.permute.xlu0 %1289
        %v1292 = vsel %vm778, %v1288, 0
        %v1295 = vsel %vm807, %v1290, 0
        %1297 = vmatpush.bf16.msra.mxu0 0
        %1298 = vmatpush.bf16.msra.mxu0 0
        %1299 = vmatpush.bf16.msra.mxu0 0
        %1300 = vmatpush.bf16.msra.mxu0 0
        %1301 = vmatpush.bf16.msra.mxu0 0
        %1302 = vmatpush.bf16.msra.mxu0 0
        %1303 = vmatpush.bf16.msra.mxu0 0
        %1304 = vmatpush.bf16.msra.mxu0 %v1295
        %1305 = vmatmul.bf16.gmra.mxu0 %v1292
        %v1306 = vpop.f32.mrf.mxu0
        %v1307 = vadd.f32 0.0, %v1306
        %v1308 = vpop.f32.mrf.mxu0
        %1309 = vdwg.mxu0
        %1311 = vrot.lane.b32.xlu0 %v893, 16
        %v1312 = vpop.permute.xlu0 %1311
        %1315 = vrot.lane.b32.xlu0 %v962, 32
        %v1316 = vpop.permute.xlu0 %1315
        %1319 = vrot.lane.b32.xlu0 %v1031, 48
        %v1320 = vpop.permute.xlu0 %1319
        %1323 = vrot.lane.b32.xlu0 %v1100, 64
        %v1324 = vpop.permute.xlu0 %1323
        %1327 = vrot.lane.b32.xlu0 %v1169, 80
        %v1328 = vpop.permute.xlu0 %1327
        %1331 = vrot.lane.b32.xlu0 %v1238, 96
        %v1332 = vpop.permute.xlu0 %1331
        %1335 = vrot.lane.b32.xlu0 %v1307, 112
        %v1336 = vpop.permute.xlu0 %1335
        %v1338 = vsel %vm758, %v821, %v1312
        %vm1339 = vcmask 261120
        %v1340 = vsel %vm1339, %v1338, %v1316
        %vm1341 = vcmask 392192
        %v1342 = vsel %vm1341, %v1340, %v1320
        %vm1343 = vcmask 523264
        %v1344 = vsel %vm1343, %v1342, %v1324
        %vm1345 = vcmask 654336
        %v1346 = vsel %vm1345, %v1344, %v1328
        %vm1347 = vcmask 785408
        %v1348 = vsel %vm1347, %v1346, %v1332
        %vm1349 = vcmask 916480
        %v1350 = vsel %vm1349, %v1348, %v1336
        %v1351 = vpack.c.bf16 %v1350, %v1350
        %v1352 = vld [vmem:[#allocation10] sm:$0xf]
        %v1353 = vld [vmem:[#allocation10 + $0x4] sm:$0xf]
        %v1354 = vld [vmem:[#allocation10 + $0x8] sm:$0xf]
        %v1355 = vld [vmem:[#allocation10 + $0xc] sm:$0xf]
        %v1356 = vld [vmem:[#allocation10 + $0x10] sm:$0xf]
        %v1357 = vld [vmem:[#allocation10 + $0x14] sm:$0xf]
        %v1358 = vld [vmem:[#allocation10 + $0x18] sm:$0xf]
        %v1359 = vld [vmem:[#allocation10 + $0x1c] sm:$0xf]
        %v1360 = vld [vmem:[#allocation10 + $0x20] sm:$0xf]
        %v1361 = vld [vmem:[#allocation10 + $0x24] sm:$0xf]
        %v1362 = vld [vmem:[#allocation10 + $0x28] sm:$0xf]
        %v1363 = vld [vmem:[#allocation10 + $0x2c] sm:$0xf]
        %v1364 = vld [vmem:[#allocation10 + $0x30] sm:$0xf]
        %v1365 = vld [vmem:[#allocation10 + $0x34] sm:$0xf]
        %v1366 = vld [vmem:[#allocation10 + $0x38] sm:$0xf]
        %v1367 = vld [vmem:[#allocation10 + $0x3c] sm:$0xf]
        %v1368 = vld [vmem:[%s8] sm:$0x1]
        %v1370 = vperm.slane %v1368, 0
        %v1388 = vunpack.c.l.b16 %v1352
        %v1389 = vunpack.c.l.b16 %v1353
        %v1390 = vunpack.c.l.b16 %v1354
        %v1391 = vunpack.c.l.b16 %v1355
        %v1392 = vunpack.c.l.b16 %v1356
        %v1393 = vunpack.c.l.b16 %v1357
        %v1394 = vunpack.c.l.b16 %v1358
        %v1395 = vunpack.c.l.b16 %v1359
        %v1396 = vunpack.c.l.b16 %v1360
        %v1397 = vunpack.c.l.b16 %v1361
        %v1398 = vunpack.c.l.b16 %v1362
        %v1399 = vunpack.c.l.b16 %v1363
        %v1400 = vunpack.c.l.b16 %v1364
        %v1401 = vunpack.c.l.b16 %v1365
        %v1402 = vunpack.c.l.b16 %v1366
        %v1403 = vunpack.c.l.b16 %v1367
        %v1404 = vpack.c.b16 %v1389, %v1388
        %v1405 = vpack.c.b16 %v1391, %v1390
        %v1406 = vpack.c.b16 %v1393, %v1392
        %v1407 = vpack.c.b16 %v1395, %v1394
        %v1408 = vpack.c.b16 %v1397, %v1396
        %v1409 = vpack.c.b16 %v1399, %v1398
        %v1410 = vpack.c.b16 %v1401, %v1400
        %v1411 = vpack.c.b16 %v1403, %v1402
        %1420 = vmatpush.bf16.msra.mxu0 %v1411
        %1421 = vmatpush.bf16.msra.mxu0 %v1410
        %1422 = vmatpush.bf16.msra.mxu0 %v1409
        %1423 = vmatpush.bf16.msra.mxu0 %v1408
        %1424 = vmatpush.bf16.msra.mxu0 %v1407
        %1425 = vmatpush.bf16.msra.mxu0 %v1406
        %1426 = vmatpush.bf16.msra.mxu0 %v1405
        %1427 = vmatpush.bf16.msra.mxu0 %v1404
        %1428 = vmatmul.bf16.gmra.mxu0 %v1351
        %v1429 = vpop.f32.mrf.mxu0
        %v1430 = vadd.f32 %v1370, %v1429
        %v1431 = vpop.f32.mrf.mxu0
        %1432 = vdwg.mxu0
        %v1433 = vadd.f32 %v509, %v1430
        %v1434 = vld [vmem:[%s9] sm:$0x1]
        %v1435 = vld [vmem:[%s10] sm:$0x1]
        %1436 = vadd.xlane.f32.xlu0 %v1433
        %v1437 = vpop.xlane.xlu0 %1436
        %v1438 = vrcp.pop 128.0
        %v1439 = vmul.f32 128.0, %v1438
        %v1440 = vsub.f32 1.0, %v1439
        %v1441 = vmul.f32 %v1438, %v1440
        %v1442 = vadd.f32 %v1438, %v1441
        %vm1443 = vweird.f32 %v1438
        %v1444 = vsel %vm1443, %v1438, %v1442
        %v1445 = vmul.f32 %v1437, %v1444
        %v1446 = vsub.f32 %v1433, %v1445
        %v1447 = vmul.f32 %v1446, %v1446
        %1448 = vadd.xlane.f32.xlu0 %v1447
        %v1449 = vpop.xlane.xlu0 %1448
        %v1450 = vmul.f32 %v1449, %v1444
        %v1451 = vadd.f32 %v1450, 1e-05
        %v1452 = vrsqrt.pop %v1451
        %v1453 = vmul.f32 %v1452, %v1451
        %v1454 = vmul.f32 %v1453, %v1452
        %v1455 = vmul.f32 0.5, %v1454
        %v1456 = vsub.f32 1.5, %v1455
        %v1457 = vmul.f32 %v1452, %v1456
        %vm1458 = vweird.f32 %v1451
        %vm1459 = vweird.f32 %v1452
        %vm1460 = vmor %vm1458, %vm1459
        %v1461 = vsel %vm1460, %v1452, %v1457
        %v1462 = vmul.f32 %v1446, %v1461
        %v1464 = vperm.slane %v1434, 0
        %v1466 = vmul.f32 %v1462, %v1464
        %v1468 = vperm.slane %v1435, 0
        %v1470 = vadd.f32 %v1466, %v1468
        %1471 = vst [vmem:[%s500] sm:$0xff] %v1470
        %v1472 = vpack.c.bf16 %v1470, %v1470
        %1473 = vst [vmem:[%s507] sm:$0xf] %v1472
        %s1474 = sand.u32 %s279, 1
        %s1475 = scalar_lea.sflag [#allocation4], %s1474
        %s1476 = sand.u32 %s279, 1
        %s1477 = smul.addr %s1476, 8
        %s1478 = scalar_lea.vmem [#allocation11], %s1477
        %s1479 = sand.u32 %s305, 1
        %s1480 = scalar_lea.sflag [#allocation13], %s1479
        %s1481 = sand.u32 %s305, 1
        %s1482 = smul.addr %s1481, 4
        %s1483 = scalar_lea.vmem [#allocation12], %s1482
        // Predicated region
        $region85: #{tpu_custom_call.1} parent=63 // pred_check
          %p1484 = pneg %p289
        $region86: #{tpu_custom_call.1} parent=63 // pred_check_branch
          %1486 = sbr.rel (%p1484) target = $region88
        $region87: #{tpu_custom_call.1} parent=63 // pred_region
          %1488 = vsyncadd %s1475, 0
          %s1489 = smul.addr %s35, 8
          %s1490 = scalar_lea.hbm %s11, %s1489
          %s1492 = sshll.u32 %s1478, 4
          %s1493 = int_to_ptr.vmem [resolvable:$true] %s1492
          %s1494 = sshll.u32 %s1490, 4
          %s1495 = int_to_ptr.hbm [resolvable:$true] %s1494
          %1497 = dma.vmem_to_hbm [thread:$0]  %s1493, 128, %s1495, %s1475
        $region88: #{tpu_custom_call.1} parent=63 // pred_fallthru
          _
        // Predicated region
        $region89: #{tpu_custom_call.1} parent=63 // pred_check
          %p1498 = pneg %p315
        $region90: #{tpu_custom_call.1} parent=63 // pred_check_branch
          %1500 = sbr.rel (%p1498) target = $region92
        $region91: #{tpu_custom_call.1} parent=63 // pred_region
          %1502 = vsyncadd %s1480, 0
          %s1503 = smul.addr %s35, 4
          %s1504 = scalar_lea.hbm %s12, %s1503
          %s1506 = sshll.u32 %s1483, 4
          %s1507 = int_to_ptr.vmem [resolvable:$true] %s1506
          %s1508 = sshll.u32 %s1504, 4
          %s1509 = int_to_ptr.hbm [resolvable:$true] %s1508
          %1511 = dma.vmem_to_hbm [thread:$0]  %s1507, 64, %s1509, %s1480
        $region92: #{tpu_custom_call.1} parent=63 // pred_fallthru
          _
      $region64: #{tpu_custom_call.1} parent=5 // pred_fallthru
        _
      %p1512 = scmp.le.s32.totalorder 2, %s30
      // Predicated region
      $region93: #{tpu_custom_call.1} parent=5 // pred_check
        %p1513 = pneg %p1512
      $region94: #{tpu_custom_call.1} parent=5 // pred_check_branch
        %1515 = sbr.rel (%p1513) target = $region96
      $region95: #{tpu_custom_call.1} parent=5 // pred_region
        %s1516 = ssub.s32 %s30, 2
        // Predicated region
        $region97: #{tpu_custom_call.1} parent=95 // pred_check
          %p1517 = pneg %p295
        $region98: #{tpu_custom_call.1} parent=95 // pred_check_branch
          %1519 = sbr.rel (%p1517) target = $region100
        $region99: #{tpu_custom_call.1} parent=95 // pred_region
          %s1520 = sand.u32 %s280, 1
          %s1521 = scalar_lea.sflag [#allocation4], %s1520
          %s1522 = sand.u32 %s280, 1
          %s1523 = smul.addr %s1522, 8
          %s1524 = scalar_lea.vmem [#allocation11], %s1523
          %1526 = dma.done %s1521, 128
        $region100: #{tpu_custom_call.1} parent=95 // pred_fallthru
          _
        // Predicated region
        $region101: #{tpu_custom_call.1} parent=95 // pred_check
          %p1527 = pneg %p321
        $region102: #{tpu_custom_call.1} parent=95 // pred_check_branch
          %1529 = sbr.rel (%p1527) target = $region104
        $region103: #{tpu_custom_call.1} parent=95 // pred_region
          %s1530 = sand.u32 %s306, 1
          %s1531 = scalar_lea.sflag [#allocation13], %s1530
          %s1532 = sand.u32 %s306, 1
          %s1533 = smul.addr %s1532, 4
          %s1534 = scalar_lea.vmem [#allocation12], %s1533
          %1536 = dma.done %s1531, 64
        $region104: #{tpu_custom_call.1} parent=95 // pred_fallthru
          _
      $region96: #{tpu_custom_call.1} parent=5 // pred_fallthru
        _
    $region6: #{tpu_custom_call.1} parent=1 // loop_footer
      %s34 = sadd.s32 1, %s30
    $region7: #{tpu_custom_call.1} parent=1 // loop_footer_branch
      %29 = sbr.rel target = $region3
    $region8: #{tpu_custom_call.1} parent=1 // loop_exit
      _
    %1537 = vsyncpa [#allocation3], 1
    %s1538 = scalar_lea.sflag [#allocation3], 1
    %1539 = vsyncpa %s1538, 1
    %1540 = vsyncpa [#allocation6], 1
    %1541 = vsyncpa [#allocation9], 1
    %1542 = vsyncpa [#allocation4], 1
    %s1543 = scalar_lea.sflag [#allocation4], 1
    %1544 = vsyncpa %s1543, 1
    %1545 = vsyncpa [#allocation13], 1
    %s1546 = scalar_lea.sflag [#allocation13], 1
    %1547 = vsyncpa %s1546, 1

</llo_original>
